<compile_context>
chip_gen: v5e
topology: v5e:2x2
jax: 0.10.0
libtpu: 0.0.40
codegen_flags: <defaults>
</compile_context>

<pallas_src>
import jax
import jax.numpy as jnp
from jax.experimental import pallas as pl
from jax.experimental.pallas import tpu as pltpu


# --------------------------------------------------------------------------- #
# Pallas kernel: whole forward for a block of BB batch elements.
# --------------------------------------------------------------------------- #
def _cleegn2vec_kernel(
    x_ref,                       # (BB, 1, C, T)
    masks_ref,                   # (KW, 1, BB*T)     temporal-tap validity masks
    w2_ref, bias2_ref,           # (NF*C, KW*C), (NF*C, BB*T)  enc1+enc2+BN folded
    w3_ref, b3_ref,              # (KW, C*NF, NF*C), (C*NF, 1) dec1+BN folded
    w45_ref, b45_ref,            # (C, C*NF), (C, 1)           dec2+dec3+BN folded
    recon_ref, latent_ref,       # (BB, 1, C, T), (BB, NF*C, T)
):
    f32 = jnp.float32
    KW = masks_ref.shape[0]
    BB = x_ref.shape[0]
    T = x_ref.shape[3]
    BBT = BB * T
    padl = (KW - 1) // 2

    def shifted(h, k):
        # out[:, j] = h[:, j + (k - padl)] within each T-wide batch segment,
        # zero where the tap falls outside the segment ('same' zero padding).
        # The circular roll wraps only into columns that the mask zeroes.
        d = k - padl
        if d == 0:
            return h
        rolled = pltpu.roll(h, shift=(-d) % BBT, axis=h.ndim - 1)   # XLU, not MXU
        return rolled * masks_ref[k]                                # VPU mask

    # Present the whole batch block as one lane-wide slab: (C, BB*T).
    x_wide = jnp.concatenate([x_ref[bb, 0] for bb in range(BB)], axis=-1)

    # ---- encoder_conv1 + encoder_conv2 (+ BN), folded: one K = KW*C matmul.
    #      lat rows are ordered (f, c) -> f*C + c, matching the latent output.
    xcat = jnp.concatenate([shifted(x_wide, k) for k in range(KW)], axis=0)
    lat = jnp.dot(w2_ref[...], xcat, preferred_element_type=f32) + bias2_ref[...]

    # Latent out: one lane-dense T-wide store per batch element.
    for bb in range(BB):
        latent_ref[bb, :, :] = lat[:, bb * T:(bb + 1) * T]

    # ---- decoder_conv1 (+ BN): KW rolled taps accumulated on the MXU.
    #      Operand re-read from the resident output block so `lat`'s live
    #      range ends at the stores above (keeps vreg pressure down at BB>1).
    lat3 = jnp.concatenate([latent_ref[bb] for bb in range(BB)], axis=-1)
    h3 = None
    for k in range(KW):
        term = jnp.dot(w3_ref[k], shifted(lat3, k), preferred_element_type=f32)
        h3 = term if h3 is None else h3 + term
    h3 = h3 + b3_ref[...]                                            # rows (c, g)

    # ---- decoder_conv2 + decoder_conv3 (+ BN), folded: one matmul.
    rec = jnp.dot(w45_ref[...], h3, preferred_element_type=f32) + b45_ref[...]
    for bb in range(BB):
        recon_ref[bb, 0, :, :] = rec[:, bb * T:(bb + 1) * T]


# --------------------------------------------------------------------------- #
# Trace-time weight folding (BatchNorm, spatial 'same' padding, stage fusion).
# --------------------------------------------------------------------------- #
def _fold_weights(params, C, T, NF, KW):
    f32 = jnp.float32
    HI = jax.lax.Precision.HIGHEST
    padl_t = (KW - 1) // 2              # PyTorch 'same' left pad (time)
    padl_h = (C - 1) // 2               # PyTorch 'same' left pad (electrode axis)

    # Stage 1: Conv2d(1, C, (C,1), 'valid') + BN2d(1), as a (C, C) matrix.
    s1 = params["s1"][0]
    t1 = params["t1"][0]
    w1f = (s1 * params["w1"]).astype(f32)                           # (C, C)
    b1c = (s1 * params["b1"] + t1).astype(f32)                      # (C,)

    # Temporal-tap validity: maskT[k, t] = 1 iff 0 <= t + k - padl_t < T.
    tt = jnp.arange(T)
    maskT = jnp.stack(
        [((tt + (k - padl_t) >= 0) & (tt + (k - padl_t) < T)).astype(f32)
         for k in range(KW)], axis=0)                               # (KW, T)

    # Stage 2: Conv2d(1, NF, (1,KW), 'same') + BN2d(NF), with encoder_conv1
    # folded in.  Rows (f, c); contraction axis ordered (k, c').
    w2s = (params["s2"][:, None] * params["w2"]).astype(f32)        # (NF, KW)
    w2kfc = jnp.einsum("fk,cd->kfcd", w2s, w1f)                     # (KW, NF, C, C)
    w2cat = jnp.transpose(w2kfc.reshape(KW, NF * C, C),
                          (1, 0, 2)).reshape(NF * C, KW * C)        # (NF*C, KW*C)
    # Additive bias map: b1's temporal-conv response (column dependent only at
    # the KW-1 boundary columns) plus the folded conv2/BN2 bias.
    b1_resp = jnp.einsum("fk,kt->ft", w2s, maskT)                   # (NF, T)
    bias2 = (b1c[None, :, None] * b1_resp[:, None, :]
             + (params["s2"] * params["b2"] + params["t2"])[:, None, None])
    bias2 = bias2.reshape(NF * C, T).astype(f32)                    # (NF*C, T)

    # Stage 3: Conv2d(NF, NF, (1,KW), 'same') + BN2d(NF); rows (c, g), cols (f, c').
    eyeC = jnp.eye(C, dtype=f32)
    w3f = (params["s3"][:, None, None] * params["w3"]).astype(f32)  # (g, f, k)
    w3 = jnp.einsum("gfk,cd->kcgfd", w3f, eyeC).reshape(KW, C * NF, NF * C)
    b3 = jnp.tile(params["s3"] * params["b3"] + params["t3"],
                  C).reshape(C * NF, 1).astype(f32)

    # Stage 4: Conv2d(NF, C, (C,1), 'same') + BN2d(C); spatial pad baked in.
    w4f = (params["s4"][:, None, None] * params["w4"]).astype(f32)  # (o, g, dh)
    hh = jnp.arange(C)[:, None]
    cc = jnp.arange(C)[None, :]
    dh4 = cc - hh + padl_h                                          # (h, c)
    val4 = (dh4 >= 0) & (dh4 < C)
    w4_tap = jnp.transpose(w4f, (2, 0, 1))[jnp.clip(dh4, 0, C - 1)] # (h, c, o, g)
    w4_tap = jnp.where(val4[:, :, None, None], w4_tap, 0.0)
    w4 = jnp.transpose(w4_tap, (0, 2, 1, 3)).reshape(C * C, C * NF) # rows (h, o)
    b4 = jnp.tile(params["s4"] * params["b4"] + params["t4"],
                  C).reshape(C * C, 1).astype(f32)

    # Stage 5: Conv2d(C, 1, (C,1), 'same'); spatial pad baked in.
    dh5 = cc - hh + padl_h                                          # (h_out, h')
    val5 = (dh5 >= 0) & (dh5 < C)
    w5_tap = params["w5"].T[jnp.clip(dh5, 0, C - 1)]                # (h_out, h', o)
    w5_tap = jnp.where(val5[:, :, None], w5_tap, 0.0)
    w5 = w5_tap.reshape(C, C * C).astype(f32)

    # Fold decoder_conv2 + decoder_conv3 into a single matmul (exact).
    w45 = jnp.dot(w5, w4, precision=HI).astype(f32)                 # (C, C*NF)
    b45 = (jnp.dot(w5, b4, precision=HI)
           + params["b5"].reshape(1, 1)).astype(f32)                # (C, 1)

    return maskT, w2cat, bias2, w3, b3, w45, b45


def _pick_block_batch(B):
    # Largest BB <= 4 dividing B that still leaves >= 2 grid steps
    # (keeps both v7x TensorCores busy); fall back to 1.
    for bb in (4, 3, 2):
        if B % bb == 0 and B // bb >= 2:
            return bb
    return 1


@jax.jit
def cleegn2vec_forward(x, params):
    B, _, C, T = x.shape
    NF, KW = params["w2"].shape
    f32 = jnp.float32

    BB = _pick_block_batch(B)
    G = B // BB

    maskT, w2cat, bias2, w3, b3, w45, b45 = _fold_weights(params, C, T, NF, KW)
    masks = jnp.tile(maskT, (1, BB))[:, None, :]        # (KW, 1, BB*T), period T
    bias2w = jnp.tile(bias2, (1, BB))                   # (NF*C, BB*T)
    wargs = (masks, w2cat, bias2w, w3, b3, w45, b45)

    def const_spec(a):
        # Whole-array block, same block every grid step (kept resident).
        return pl.BlockSpec(a.shape, lambda g, _nd=a.ndim: (0,) * _nd)

    grid_spec = pltpu.PrefetchScalarGridSpec(
        num_scalar_prefetch=0,
        grid=(G,),
        in_specs=[pl.BlockSpec((BB, 1, C, T), lambda g: (g, 0, 0, 0))]
                 + [const_spec(a) for a in wargs],
        out_specs=[pl.BlockSpec((BB, 1, C, T), lambda g: (g, 0, 0, 0)),
                   pl.BlockSpec((BB, NF * C, T), lambda g: (g, 0, 0))],
    )

    recon, latent_flat = pl.pallas_call(
        _cleegn2vec_kernel,
        out_shape=(jax.ShapeDtypeStruct((B, 1, C, T), f32),
                   jax.ShapeDtypeStruct((B, NF * C, T), f32)),
        grid_spec=grid_spec,
        compiler_params=pltpu.CompilerParams(
            dimension_semantics=("parallel",)),
    )(x.astype(f32), *wargs)

    latent = latent_flat.reshape(B, NF, C, T)      # free: rows are (f, c)
    return recon, latent


# --------------------------------------------------------------------------- #
# Deterministic parameter init (BatchNorm as inference-mode scale/shift).
# --------------------------------------------------------------------------- #
def init_params(key, C, NF, KW, eps=1e-3):
    keys = iter(jax.random.split(key, 32))
    nk = lambda: next(keys)

    def bn_fold(n):
        gamma = 1.0 + 0.1 * jax.random.normal(nk(), (n,), jnp.float32)
        beta = 0.1 * jax.random.normal(nk(), (n,), jnp.float32)
        mean = 0.1 * jax.random.normal(nk(), (n,), jnp.float32)
        var = 1.0 + 0.5 * jax.random.uniform(nk(), (n,), jnp.float32)
        s = gamma / jnp.sqrt(var + eps)
        t = beta - mean * s
        return s, t

    p = {}
    p["w1"] = jax.random.normal(nk(), (C, C), jnp.float32) / jnp.sqrt(C)
    p["b1"] = 0.1 * jax.random.normal(nk(), (C,), jnp.float32)
    p["s1"], p["t1"] = bn_fold(1)
    p["w2"] = jax.random.normal(nk(), (NF, KW), jnp.float32) / jnp.sqrt(KW)
    p["b2"] = 0.1 * jax.random.normal(nk(), (NF,), jnp.float32)
    p["s2"], p["t2"] = bn_fold(NF)
    p["w3"] = jax.random.normal(nk(), (NF, NF, KW), jnp.float32) / jnp.sqrt(NF * KW)
    p["b3"] = 0.1 * jax.random.normal(nk(), (NF,), jnp.float32)
    p["s3"], p["t3"] = bn_fold(NF)
    p["w4"] = jax.random.normal(nk(), (C, NF, C), jnp.float32) / jnp.sqrt(NF * C)
    p["b4"] = 0.1 * jax.random.normal(nk(), (C,), jnp.float32)
    p["s4"], p["t4"] = bn_fold(C)
    p["w5"] = jax.random.normal(nk(), (C, C), jnp.float32) / jnp.sqrt(C * C)
    p["b5"] = 0.1 * jax.random.normal(nk(), (1,), jnp.float32)
    return p


# --------------------------------------------------------------------------- #
# Pure-JAX reference (same math as the PyTorch module, inference-mode BN),
# computed at HIGHEST matmul precision.
# --------------------------------------------------------------------------- #
def reference_forward(x, p):
    HI = jax.lax.Precision.HIGHEST
    B, _, C, T = x.shape
    NF, KW = p["w2"].shape
    padl_t = (KW - 1) // 2
    padl_h = (C - 1) // 2

    xb = x[:, 0]                                                          # (B, C, T)
    h1 = jnp.einsum("oh,bht->bot", p["w1"], xb, precision=HI) + p["b1"][None, :, None]
    h1 = h1 * p["s1"] + p["t1"]

    h1p = jnp.pad(h1, ((0, 0), (0, 0), (padl_t, KW - 1 - padl_t)))
    lat = jnp.zeros((B, NF, C, T), jnp.float32)
    for k in range(KW):
        lat = lat + p["w2"][:, k][None, :, None, None] * h1p[:, None, :, k:k + T]
    lat = (lat + p["b2"][None, :, None, None]) * p["s2"][None, :, None, None] \
          + p["t2"][None, :, None, None]

    latp = jnp.pad(lat, ((0, 0), (0, 0), (0, 0), (padl_t, KW - 1 - padl_t)))
    h3 = jnp.zeros((B, NF, C, T), jnp.float32)
    for k in range(KW):
        h3 = h3 + jnp.einsum("fg,bgct->bfct", p["w3"][:, :, k], latp[..., k:k + T],
                             precision=HI)
    h3 = (h3 + p["b3"][None, :, None, None]) * p["s3"][None, :, None, None] \
         + p["t3"][None, :, None, None]

    h3p = jnp.pad(h3, ((0, 0), (0, 0), (padl_h, C - 1 - padl_h), (0, 0)))
    h4 = jnp.zeros((B, C, C, T), jnp.float32)
    for dh in range(C):
        h4 = h4 + jnp.einsum("og,bght->boht", p["w4"][:, :, dh], h3p[:, :, dh:dh + C, :],
                             precision=HI)
    h4 = (h4 + p["b4"][None, :, None, None]) * p["s4"][None, :, None, None] \
         + p["t4"][None, :, None, None]

    h4p = jnp.pad(h4, ((0, 0), (0, 0), (padl_h, C - 1 - padl_h), (0, 0)))
    rec = jnp.zeros((B, C, T), jnp.float32)
    for dh in range(C):
        rec = rec + jnp.einsum("g,bght->bht", p["w5"][:, dh], h4p[:, :, dh:dh + C, :],
                               precision=HI)
    rec = rec + p["b5"]
    return rec[:, None], lat


# --------------------------------------------------------------------------- #
if __name__ == "__main__":
    B, n_chan, fs, N_F, T = 4, 8, 40, 16, 128
    tem_kernelLen = 0.1
    KW = int(fs * tem_kernelLen)                       # = 4

    key = jax.random.PRNGKey(0)
    kx, kp = jax.random.split(key)
    x = jax.random.normal(kx, (B, 1, n_chan, T), jnp.float32)
    params = init_params(kp, n_chan, N_F, KW)

    recon, latent = cleegn2vec_forward(x, params)
    jax.block_until_ready((recon, latent))

    assert recon.shape == (B, 1, n_chan, T), recon.shape
    assert latent.shape == (B, N_F, n_chan, T), latent.shape

    rec_ref, lat_ref = reference_forward(x, params)
    scale_r = float(jnp.maximum(jnp.max(jnp.abs(rec_ref)), 1.0))
    scale_l = float(jnp.maximum(jnp.max(jnp.abs(lat_ref)), 1.0))
    err_r = float(jnp.max(jnp.abs(recon - rec_ref)))
    err_l = float(jnp.max(jnp.abs(latent - lat_ref)))
    assert err_l <= 2e-2 * scale_l, ("latent mismatch", err_l, scale_l)
    assert err_r <= 2e-2 * scale_r, ("reconstruction mismatch", err_r, scale_r)

    print("KERNEL_OK")
</pallas_src>

<mosaic_0001>
module attributes {stable_mosaic.version = 11 : i64} {
  func.func @_cleegn2vec_kernel(%arg0: i32, %arg1: memref<2x1x8x128xf32, #tpu.memory_space<vmem>>, %arg2: memref<4x1x256xf32, #tpu.memory_space<vmem>>, %arg3: memref<128x32xf32, #tpu.memory_space<vmem>>, %arg4: memref<128x256xf32, #tpu.memory_space<vmem>>, %arg5: memref<4x128x128xf32, #tpu.memory_space<vmem>>, %arg6: memref<128x1xf32, #tpu.memory_space<vmem>>, %arg7: memref<8x128xf32, #tpu.memory_space<vmem>>, %arg8: memref<8x1xf32, #tpu.memory_space<vmem>>, %arg9: memref<2x1x8x128xf32, #tpu.memory_space<vmem>>, %arg10: memref<2x128x128xf32, #tpu.memory_space<vmem>>) attributes {dimension_semantics = [#tpu.dimension_semantics<parallel>], iteration_bounds = array<i64: 2>, scalar_prefetch = 0 : i64, scratch_operands = 0 : i64, tpu.core_type = #tpu.core_type<tc>, window_params = [{transform_indices = @transform_0, window_bounds = array<i64: 2, 1, 8, 128>}, {pipeline_mode = #tpu.pipeline_mode<synchronous>, transform_indices = @transform_1, window_bounds = array<i64: 4, 1, 256>}, {pipeline_mode = #tpu.pipeline_mode<synchronous>, transform_indices = @transform_2, window_bounds = array<i64: 128, 32>}, {pipeline_mode = #tpu.pipeline_mode<synchronous>, transform_indices = @transform_3, window_bounds = array<i64: 128, 256>}, {pipeline_mode = #tpu.pipeline_mode<synchronous>, transform_indices = @transform_4, window_bounds = array<i64: 4, 128, 128>}, {pipeline_mode = #tpu.pipeline_mode<synchronous>, transform_indices = @transform_5, window_bounds = array<i64: 128, 1>}, {pipeline_mode = #tpu.pipeline_mode<synchronous>, transform_indices = @transform_6, window_bounds = array<i64: 8, 128>}, {pipeline_mode = #tpu.pipeline_mode<synchronous>, transform_indices = @transform_7, window_bounds = array<i64: 8, 1>}, {transform_indices = @transform_8, window_bounds = array<i64: 2, 1, 8, 128>}, {transform_indices = @transform_9, window_bounds = array<i64: 2, 128, 128>}]} {
    %c0 = arith.constant 0 : index
    %c0_0 = arith.constant 0 : index
    %c0_1 = arith.constant 0 : index
    %c0_2 = arith.constant 0 : index
    %0 = vector.load %arg1[%c0, %c0_0, %c0_1, %c0_2] : memref<2x1x8x128xf32, #tpu.memory_space<vmem>>, vector<1x1x8x128xf32>
    %1 = vector.shape_cast %0 : vector<1x1x8x128xf32> to vector<8x128xf32>
    %c1 = arith.constant 1 : index
    %c0_3 = arith.constant 0 : index
    %c0_4 = arith.constant 0 : index
    %c0_5 = arith.constant 0 : index
    %2 = vector.load %arg1[%c1, %c0_3, %c0_4, %c0_5] : memref<2x1x8x128xf32, #tpu.memory_space<vmem>>, vector<1x1x8x128xf32>
    %3 = vector.shape_cast %2 : vector<1x1x8x128xf32> to vector<8x128xf32>
    %4 = tpu.concatenate %1, %3 in 1 : vector<8x128xf32>, vector<8x128xf32> -> vector<8x256xf32>
    %c1_i32 = arith.constant 1 : i32
    %5 = tpu.dynamic_rotate %4 by %c1_i32 dim 1 : vector<8x256xf32>, i32 -> vector<8x256xf32>
    %c0_6 = arith.constant 0 : index
    %c0_7 = arith.constant 0 : index
    %c0_8 = arith.constant 0 : index
    %6 = vector.load %arg2[%c0_6, %c0_7, %c0_8] : memref<4x1x256xf32, #tpu.memory_space<vmem>>, vector<1x1x256xf32>
    %7 = vector.shape_cast %6 : vector<1x1x256xf32> to vector<1x256xf32>
    %8 = vector.broadcast %7 : vector<1x256xf32> to vector<8x256xf32>
    %9 = arith.mulf %5, %8 : vector<8x256xf32>
    %c255_i32 = arith.constant 255 : i32
    %10 = tpu.dynamic_rotate %4 by %c255_i32 dim 1 : vector<8x256xf32>, i32 -> vector<8x256xf32>
    %c2 = arith.constant 2 : index
    %c0_9 = arith.constant 0 : index
    %c0_10 = arith.constant 0 : index
    %11 = vector.load %arg2[%c2, %c0_9, %c0_10] : memref<4x1x256xf32, #tpu.memory_space<vmem>>, vector<1x1x256xf32>
    %12 = vector.shape_cast %11 : vector<1x1x256xf32> to vector<1x256xf32>
    %13 = vector.broadcast %12 : vector<1x256xf32> to vector<8x256xf32>
    %14 = arith.mulf %10, %13 : vector<8x256xf32>
    %c254_i32 = arith.constant 254 : i32
    %15 = tpu.dynamic_rotate %4 by %c254_i32 dim 1 : vector<8x256xf32>, i32 -> vector<8x256xf32>
    %c3 = arith.constant 3 : index
    %c0_11 = arith.constant 0 : index
    %c0_12 = arith.constant 0 : index
    %16 = vector.load %arg2[%c3, %c0_11, %c0_12] : memref<4x1x256xf32, #tpu.memory_space<vmem>>, vector<1x1x256xf32>
    %17 = vector.shape_cast %16 : vector<1x1x256xf32> to vector<1x256xf32>
    %18 = vector.broadcast %17 : vector<1x256xf32> to vector<8x256xf32>
    %19 = arith.mulf %15, %18 : vector<8x256xf32>
    %20 = tpu.concatenate %9, %4, %14, %19 in 0 : vector<8x256xf32>, vector<8x256xf32>, vector<8x256xf32>, vector<8x256xf32> -> vector<32x256xf32>
    %c0_13 = arith.constant 0 : index
    %c0_14 = arith.constant 0 : index
    %21 = vector.load %arg3[%c0_13, %c0_14] : memref<128x32xf32, #tpu.memory_space<vmem>>, vector<128x32xf32>
    %cst = arith.constant dense<0.000000e+00> : vector<128x256xf32>
    %22 = tpu.matmul %21, %20, %cst {dimension_numbers = #tpu.dot_dimension_numbers<[1], [0], [0], [1], [0, 0, 1, 1], [], []>} : vector<128x32xf32>, vector<32x256xf32>, vector<128x256xf32> -> vector<128x256xf32>
    %c0_15 = arith.constant 0 : index
    %c0_16 = arith.constant 0 : index
    %23 = vector.load %arg4[%c0_15, %c0_16] : memref<128x256xf32, #tpu.memory_space<vmem>>, vector<128x256xf32>
    %24 = arith.addf %22, %23 : vector<128x256xf32>
    %25 = vector.extract_strided_slice %24 {offsets = [0, 0], sizes = [128, 128], strides = [1, 1]} : vector<128x256xf32> to vector<128x128xf32>
    %c0_17 = arith.constant 0 : index
    %c0_18 = arith.constant 0 : index
    %c0_19 = arith.constant 0 : index
    %26 = vector.load %arg10[%c0_17, %c0_18, %c0_19] : memref<2x128x128xf32, #tpu.memory_space<vmem>>, vector<1x128x128xf32>
    %27 = vector.shape_cast %26 : vector<1x128x128xf32> to vector<128x128xf32>
    %28 = vector.shape_cast %25 : vector<128x128xf32> to vector<1x128x128xf32>
    tpu.vector_store %arg10[%c0_17, %c0_18, %c0_19], %28 {strides = array<i32>} : memref<2x128x128xf32, #tpu.memory_space<vmem>>, vector<1x128x128xf32>,
    %29 = vector.extract_strided_slice %24 {offsets = [0, 128], sizes = [128, 128], strides = [1, 1]} : vector<128x256xf32> to vector<128x128xf32>
    %c1_20 = arith.constant 1 : index
    %c0_21 = arith.constant 0 : index
    %c0_22 = arith.constant 0 : index
    %30 = vector.load %arg10[%c1_20, %c0_21, %c0_22] : memref<2x128x128xf32, #tpu.memory_space<vmem>>, vector<1x128x128xf32>
    %31 = vector.shape_cast %30 : vector<1x128x128xf32> to vector<128x128xf32>
    %32 = vector.shape_cast %29 : vector<128x128xf32> to vector<1x128x128xf32>
    tpu.vector_store %arg10[%c1_20, %c0_21, %c0_22], %32 {strides = array<i32>} : memref<2x128x128xf32, #tpu.memory_space<vmem>>, vector<1x128x128xf32>,
    %c0_23 = arith.constant 0 : index
    %c0_24 = arith.constant 0 : index
    %c0_25 = arith.constant 0 : index
    %33 = vector.load %arg10[%c0_23, %c0_24, %c0_25] : memref<2x128x128xf32, #tpu.memory_space<vmem>>, vector<1x128x128xf32>
    %34 = vector.shape_cast %33 : vector<1x128x128xf32> to vector<128x128xf32>
    %c1_26 = arith.constant 1 : index
    %c0_27 = arith.constant 0 : index
    %c0_28 = arith.constant 0 : index
    %35 = vector.load %arg10[%c1_26, %c0_27, %c0_28] : memref<2x128x128xf32, #tpu.memory_space<vmem>>, vector<1x128x128xf32>
    %36 = vector.shape_cast %35 : vector<1x128x128xf32> to vector<128x128xf32>
    %37 = tpu.concatenate %34, %36 in 1 : vector<128x128xf32>, vector<128x128xf32> -> vector<128x256xf32>
    %c0_29 = arith.constant 0 : index
    %c0_30 = arith.constant 0 : index
    %c0_31 = arith.constant 0 : index
    %38 = vector.load %arg5[%c0_29, %c0_30, %c0_31] : memref<4x128x128xf32, #tpu.memory_space<vmem>>, vector<1x128x128xf32>
    %39 = vector.shape_cast %38 : vector<1x128x128xf32> to vector<128x128xf32>
    %c1_i32_32 = arith.constant 1 : i32
    %40 = tpu.dynamic_rotate %37 by %c1_i32_32 dim 1 : vector<128x256xf32>, i32 -> vector<128x256xf32>
    %c0_33 = arith.constant 0 : index
    %c0_34 = arith.constant 0 : index
    %c0_35 = arith.constant 0 : index
    %41 = vector.load %arg2[%c0_33, %c0_34, %c0_35] : memref<4x1x256xf32, #tpu.memory_space<vmem>>, vector<1x1x256xf32>
    %42 = vector.shape_cast %41 : vector<1x1x256xf32> to vector<1x256xf32>
    %43 = vector.broadcast %42 : vector<1x256xf32> to vector<128x256xf32>
    %44 = arith.mulf %40, %43 : vector<128x256xf32>
    %cst_36 = arith.constant dense<0.000000e+00> : vector<128x256xf32>
    %45 = tpu.matmul %39, %44, %cst_36 {dimension_numbers = #tpu.dot_dimension_numbers<[1], [0], [0], [1], [0, 0, 1, 1], [], []>} : vector<128x128xf32>, vector<128x256xf32>, vector<128x256xf32> -> vector<128x256xf32>
    %c1_37 = arith.constant 1 : index
    %c0_38 = arith.constant 0 : index
    %c0_39 = arith.constant 0 : index
    %46 = vector.load %arg5[%c1_37, %c0_38, %c0_39] : memref<4x128x128xf32, #tpu.memory_space<vmem>>, vector<1x128x128xf32>
    %47 = vector.shape_cast %46 : vector<1x128x128xf32> to vector<128x128xf32>
    %cst_40 = arith.constant dense<0.000000e+00> : vector<128x256xf32>
    %48 = tpu.matmul %47, %37, %cst_40 {dimension_numbers = #tpu.dot_dimension_numbers<[1], [0], [0], [1], [0, 0, 1, 1], [], []>} : vector<128x128xf32>, vector<128x256xf32>, vector<128x256xf32> -> vector<128x256xf32>
    %49 = arith.addf %45, %48 : vector<128x256xf32>
    %c2_41 = arith.constant 2 : index
    %c0_42 = arith.constant 0 : index
    %c0_43 = arith.constant 0 : index
    %50 = vector.load %arg5[%c2_41, %c0_42, %c0_43] : memref<4x128x128xf32, #tpu.memory_space<vmem>>, vector<1x128x128xf32>
    %51 = vector.shape_cast %50 : vector<1x128x128xf32> to vector<128x128xf32>
    %c255_i32_44 = arith.constant 255 : i32
    %52 = tpu.dynamic_rotate %37 by %c255_i32_44 dim 1 : vector<128x256xf32>, i32 -> vector<128x256xf32>
    %c2_45 = arith.constant 2 : index
    %c0_46 = arith.constant 0 : index
    %c0_47 = arith.constant 0 : index
    %53 = vector.load %arg2[%c2_45, %c0_46, %c0_47] : memref<4x1x256xf32, #tpu.memory_space<vmem>>, vector<1x1x256xf32>
    %54 = vector.shape_cast %53 : vector<1x1x256xf32> to vector<1x256xf32>
    %55 = vector.broadcast %54 : vector<1x256xf32> to vector<128x256xf32>
    %56 = arith.mulf %52, %55 : vector<128x256xf32>
    %cst_48 = arith.constant dense<0.000000e+00> : vector<128x256xf32>
    %57 = tpu.matmul %51, %56, %cst_48 {dimension_numbers = #tpu.dot_dimension_numbers<[1], [0], [0], [1], [0, 0, 1, 1], [], []>} : vector<128x128xf32>, vector<128x256xf32>, vector<128x256xf32> -> vector<128x256xf32>
    %58 = arith.addf %49, %57 : vector<128x256xf32>
    %c3_49 = arith.constant 3 : index
    %c0_50 = arith.constant 0 : index
    %c0_51 = arith.constant 0 : index
    %59 = vector.load %arg5[%c3_49, %c0_50, %c0_51] : memref<4x128x128xf32, #tpu.memory_space<vmem>>, vector<1x128x128xf32>
    %60 = vector.shape_cast %59 : vector<1x128x128xf32> to vector<128x128xf32>
    %c254_i32_52 = arith.constant 254 : i32
    %61 = tpu.dynamic_rotate %37 by %c254_i32_52 dim 1 : vector<128x256xf32>, i32 -> vector<128x256xf32>
    %c3_53 = arith.constant 3 : index
    %c0_54 = arith.constant 0 : index
    %c0_55 = arith.constant 0 : index
    %62 = vector.load %arg2[%c3_53, %c0_54, %c0_55] : memref<4x1x256xf32, #tpu.memory_space<vmem>>, vector<1x1x256xf32>
    %63 = vector.shape_cast %62 : vector<1x1x256xf32> to vector<1x256xf32>
    %64 = vector.broadcast %63 : vector<1x256xf32> to vector<128x256xf32>
    %65 = arith.mulf %61, %64 : vector<128x256xf32>
    %cst_56 = arith.constant dense<0.000000e+00> : vector<128x256xf32>
    %66 = tpu.matmul %60, %65, %cst_56 {dimension_numbers = #tpu.dot_dimension_numbers<[1], [0], [0], [1], [0, 0, 1, 1], [], []>} : vector<128x128xf32>, vector<128x256xf32>, vector<128x256xf32> -> vector<128x256xf32>
    %67 = arith.addf %58, %66 : vector<128x256xf32>
    %c0_57 = arith.constant 0 : index
    %c0_58 = arith.constant 0 : index
    %68 = vector.load %arg6[%c0_57, %c0_58] : memref<128x1xf32, #tpu.memory_space<vmem>>, vector<128x1xf32>
    %69 = vector.broadcast %68 : vector<128x1xf32> to vector<128x256xf32>
    %70 = arith.addf %67, %69 : vector<128x256xf32>
    %c0_59 = arith.constant 0 : index
    %c0_60 = arith.constant 0 : index
    %71 = vector.load %arg7[%c0_59, %c0_60] : memref<8x128xf32, #tpu.memory_space<vmem>>, vector<8x128xf32>
    %cst_61 = arith.constant dense<0.000000e+00> : vector<8x256xf32>
    %72 = tpu.matmul %71, %70, %cst_61 {dimension_numbers = #tpu.dot_dimension_numbers<[1], [0], [0], [1], [0, 0, 1, 1], [], []>} : vector<8x128xf32>, vector<128x256xf32>, vector<8x256xf32> -> vector<8x256xf32>
    %c0_62 = arith.constant 0 : index
    %c0_63 = arith.constant 0 : index
    %73 = vector.load %arg8[%c0_62, %c0_63] : memref<8x1xf32, #tpu.memory_space<vmem>>, vector<8x1xf32>
    %74 = vector.broadcast %73 : vector<8x1xf32> to vector<8x256xf32>
    %75 = arith.addf %72, %74 : vector<8x256xf32>
    %76 = vector.extract_strided_slice %75 {offsets = [0, 0], sizes = [8, 128], strides = [1, 1]} : vector<8x256xf32> to vector<8x128xf32>
    %c0_64 = arith.constant 0 : index
    %c0_65 = arith.constant 0 : index
    %c0_66 = arith.constant 0 : index
    %c0_67 = arith.constant 0 : index
    %77 = vector.load %arg9[%c0_64, %c0_65, %c0_66, %c0_67] : memref<2x1x8x128xf32, #tpu.memory_space<vmem>>, vector<1x1x8x128xf32>
    %78 = vector.shape_cast %77 : vector<1x1x8x128xf32> to vector<8x128xf32>
    %79 = vector.shape_cast %76 : vector<8x128xf32> to vector<1x1x8x128xf32>
    tpu.vector_store %arg9[%c0_64, %c0_65, %c0_66, %c0_67], %79 {strides = array<i32>} : memref<2x1x8x128xf32, #tpu.memory_space<vmem>>, vector<1x1x8x128xf32>,
    %80 = vector.extract_strided_slice %75 {offsets = [0, 128], sizes = [8, 128], strides = [1, 1]} : vector<8x256xf32> to vector<8x128xf32>
    %c1_68 = arith.constant 1 : index
    %c0_69 = arith.constant 0 : index
    %c0_70 = arith.constant 0 : index
    %c0_71 = arith.constant 0 : index
    %81 = vector.load %arg9[%c1_68, %c0_69, %c0_70, %c0_71] : memref<2x1x8x128xf32, #tpu.memory_space<vmem>>, vector<1x1x8x128xf32>
    %82 = vector.shape_cast %81 : vector<1x1x8x128xf32> to vector<8x128xf32>
    %83 = vector.shape_cast %80 : vector<8x128xf32> to vector<1x1x8x128xf32>
    tpu.vector_store %arg9[%c1_68, %c0_69, %c0_70, %c0_71], %83 {strides = array<i32>} : memref<2x1x8x128xf32, #tpu.memory_space<vmem>>, vector<1x1x8x128xf32>,
    return
  }
  func.func @transform_0(%arg0: i32) -> (i32, i32, i32, i32) {
    %c0_i32 = arith.constant 0 : i32
    %c0_i32_0 = arith.constant 0 : i32
    %c0_i32_1 = arith.constant 0 : i32
    %c0_i32_2 = arith.constant 0 : i32
    return %arg0, %c0_i32, %c0_i32_0, %c0_i32_1 : i32, i32, i32, i32
  }
  func.func @transform_1(%arg0: i32) -> (i32, i32, i32) {
    %c0_i32 = arith.constant 0 : i32
    %c0_i32_0 = arith.constant 0 : i32
    %c0_i32_1 = arith.constant 0 : i32
    %c0_i32_2 = arith.constant 0 : i32
    return %c0_i32, %c0_i32_0, %c0_i32_1 : i32, i32, i32
  }
  func.func @transform_2(%arg0: i32) -> (i32, i32) {
    %c0_i32 = arith.constant 0 : i32
    %c0_i32_0 = arith.constant 0 : i32
    %c0_i32_1 = arith.constant 0 : i32
    return %c0_i32, %c0_i32_0 : i32, i32
  }
  func.func @transform_3(%arg0: i32) -> (i32, i32) {
    %c0_i32 = arith.constant 0 : i32
    %c0_i32_0 = arith.constant 0 : i32
    %c0_i32_1 = arith.constant 0 : i32
    return %c0_i32, %c0_i32_0 : i32, i32
  }
  func.func @transform_4(%arg0: i32) -> (i32, i32, i32) {
    %c0_i32 = arith.constant 0 : i32
    %c0_i32_0 = arith.constant 0 : i32
    %c0_i32_1 = arith.constant 0 : i32
    %c0_i32_2 = arith.constant 0 : i32
    return %c0_i32, %c0_i32_0, %c0_i32_1 : i32, i32, i32
  }
  func.func @transform_5(%arg0: i32) -> (i32, i32) {
    %c0_i32 = arith.constant 0 : i32
    %c0_i32_0 = arith.constant 0 : i32
    %c0_i32_1 = arith.constant 0 : i32
    return %c0_i32, %c0_i32_0 : i32, i32
  }
  func.func @transform_6(%arg0: i32) -> (i32, i32) {
    %c0_i32 = arith.constant 0 : i32
    %c0_i32_0 = arith.constant 0 : i32
    %c0_i32_1 = arith.constant 0 : i32
    return %c0_i32, %c0_i32_0 : i32, i32
  }
  func.func @transform_7(%arg0: i32) -> (i32, i32) {
    %c0_i32 = arith.constant 0 : i32
    %c0_i32_0 = arith.constant 0 : i32
    %c0_i32_1 = arith.constant 0 : i32
    return %c0_i32, %c0_i32_0 : i32, i32
  }
  func.func @transform_8(%arg0: i32) -> (i32, i32, i32, i32) {
    %c0_i32 = arith.constant 0 : i32
    %c0_i32_0 = arith.constant 0 : i32
    %c0_i32_1 = arith.constant 0 : i32
    %c0_i32_2 = arith.constant 0 : i32
    return %arg0, %c0_i32, %c0_i32_0, %c0_i32_1 : i32, i32, i32, i32
  }
  func.func @transform_9(%arg0: i32) -> (i32, i32, i32) {
    %c0_i32 = arith.constant 0 : i32
    %c0_i32_0 = arith.constant 0 : i32
    %c0_i32_1 = arith.constant 0 : i32
    return %arg0, %c0_i32, %c0_i32_0 : i32, i32, i32
  }
}

</mosaic_0001>

<llo_original>
// kernel: tile.22
$region0: #{tile.22}
  #allocation0 [shape = 's32[1]{0}', space=sflag, size = 0x4, scoped, tag = 'scoped memory for tile.22']
  %s0 = inlined_call_operand.vmem [shape: f32[16], index: 0, kind: input, shape index: {}]
  %s1 = inlined_call_operand.vmem [shape: f32[8,16], index: 1, kind: output, shape index: {}]
  // Predicated region
  $region2: #{tile.22} parent=0 // pred_check
    _
  $region3: #{tile.22} parent=0 // pred_check_branch
    %3 = sbr.rel (0) target = $region5
  $region4: #{tile.22} parent=0 // pred_region
    _
  $region5: #{tile.22} parent=0 // pred_fallthru
    _
  %v4 = vld [vmem:[%s0] ss:$0 sm:$0xff]
  %5 = vst [vmem:[%s1] sm:$0xff] %v4

// kernel: tile.0
$region0: #{tile.0}
  %s0 = inlined_call_operand.vmem [shape: f32[8,16], index: 0, kind: input, shape index: {}]
  %s1 = inlined_call_operand.vmem [shape: f32[128,1], index: 1, kind: output, shape index: {}]
  %v2 = vld [vmem:[%s0] sm:$0xff]
  %vm3 = vcmask 7168
  %4 = vst.msk [vmem:[%s1] ss:$16 sm:$0x3] %vm3, %v2
  %5 = vst.msk [vmem:[%s1] ss:$16 sm:$0xc] %vm3, %v2
  %6 = vst.msk [vmem:[%s1] ss:$16 sm:$0x30] %vm3, %v2
  %7 = vst.msk [vmem:[%s1] ss:$16 sm:$0xc0] %vm3, %v2
  %v8 = vld [vmem:[%s0] sm:$0xff]
  %9 = vrot.lane.b32.xlu0 %v8, 127
  %v10 = vpop.permute.xlu0 %9
  %vm11 = vcmask 7168
  %s12 = scalar_lea.vmem %s1, 1
  %13 = vst.msk [vmem:[%s12] ss:$16 sm:$0x3] %vm11, %v10
  %s14 = scalar_lea.vmem %s1, 1
  %15 = vst.msk [vmem:[%s14] ss:$16 sm:$0xc] %vm11, %v10
  %s16 = scalar_lea.vmem %s1, 1
  %17 = vst.msk [vmem:[%s16] ss:$16 sm:$0x30] %vm11, %v10
  %s18 = scalar_lea.vmem %s1, 1
  %19 = vst.msk [vmem:[%s18] ss:$16 sm:$0xc0] %vm11, %v10
  %v20 = vld [vmem:[%s0] sm:$0xff]
  %21 = vrot.lane.b32.xlu0 %v20, 126
  %v22 = vpop.permute.xlu0 %21
  %vm23 = vcmask 7168
  %s24 = scalar_lea.vmem %s1, 2
  %25 = vst.msk [vmem:[%s24] ss:$16 sm:$0x3] %vm23, %v22
  %s26 = scalar_lea.vmem %s1, 2
  %27 = vst.msk [vmem:[%s26] ss:$16 sm:$0xc] %vm23, %v22
  %s28 = scalar_lea.vmem %s1, 2
  %29 = vst.msk [vmem:[%s28] ss:$16 sm:$0x30] %vm23, %v22
  %s30 = scalar_lea.vmem %s1, 2
  %31 = vst.msk [vmem:[%s30] ss:$16 sm:$0xc0] %vm23, %v22
  %v32 = vld [vmem:[%s0] sm:$0xff]
  %33 = vrot.lane.b32.xlu0 %v32, 125
  %v34 = vpop.permute.xlu0 %33
  %vm35 = vcmask 7168
  %s36 = scalar_lea.vmem %s1, 3
  %37 = vst.msk [vmem:[%s36] ss:$16 sm:$0x3] %vm35, %v34
  %s38 = scalar_lea.vmem %s1, 3
  %39 = vst.msk [vmem:[%s38] ss:$16 sm:$0xc] %vm35, %v34
  %s40 = scalar_lea.vmem %s1, 3
  %41 = vst.msk [vmem:[%s40] ss:$16 sm:$0x30] %vm35, %v34
  %s42 = scalar_lea.vmem %s1, 3
  %43 = vst.msk [vmem:[%s42] ss:$16 sm:$0xc0] %vm35, %v34
  %v44 = vld [vmem:[%s0] sm:$0xff]
  %45 = vrot.lane.b32.xlu0 %v44, 124
  %v46 = vpop.permute.xlu0 %45
  %vm47 = vcmask 7168
  %s48 = scalar_lea.vmem %s1, 4
  %49 = vst.msk [vmem:[%s48] ss:$16 sm:$0x3] %vm47, %v46
  %s50 = scalar_lea.vmem %s1, 4
  %51 = vst.msk [vmem:[%s50] ss:$16 sm:$0xc] %vm47, %v46
  %s52 = scalar_lea.vmem %s1, 4
  %53 = vst.msk [vmem:[%s52] ss:$16 sm:$0x30] %vm47, %v46
  %s54 = scalar_lea.vmem %s1, 4
  %55 = vst.msk [vmem:[%s54] ss:$16 sm:$0xc0] %vm47, %v46
  %v56 = vld [vmem:[%s0] sm:$0xff]
  %57 = vrot.lane.b32.xlu0 %v56, 123
  %v58 = vpop.permute.xlu0 %57
  %vm59 = vcmask 7168
  %s60 = scalar_lea.vmem %s1, 5
  %61 = vst.msk [vmem:[%s60] ss:$16 sm:$0x3] %vm59, %v58
  %s62 = scalar_lea.vmem %s1, 5
  %63 = vst.msk [vmem:[%s62] ss:$16 sm:$0xc] %vm59, %v58
  %s64 = scalar_lea.vmem %s1, 5
  %65 = vst.msk [vmem:[%s64] ss:$16 sm:$0x30] %vm59, %v58
  %s66 = scalar_lea.vmem %s1, 5
  %67 = vst.msk [vmem:[%s66] ss:$16 sm:$0xc0] %vm59, %v58
  %v68 = vld [vmem:[%s0] sm:$0xff]
  %69 = vrot.lane.b32.xlu0 %v68, 122
  %v70 = vpop.permute.xlu0 %69
  %vm71 = vcmask 7168
  %s72 = scalar_lea.vmem %s1, 6
  %73 = vst.msk [vmem:[%s72] ss:$16 sm:$0x3] %vm71, %v70
  %s74 = scalar_lea.vmem %s1, 6
  %75 = vst.msk [vmem:[%s74] ss:$16 sm:$0xc] %vm71, %v70
  %s76 = scalar_lea.vmem %s1, 6
  %77 = vst.msk [vmem:[%s76] ss:$16 sm:$0x30] %vm71, %v70
  %s78 = scalar_lea.vmem %s1, 6
  %79 = vst.msk [vmem:[%s78] ss:$16 sm:$0xc0] %vm71, %v70
  %v80 = vld [vmem:[%s0] sm:$0xff]
  %81 = vrot.lane.b32.xlu0 %v80, 121
  %v82 = vpop.permute.xlu0 %81
  %vm83 = vcmask 7168
  %s84 = scalar_lea.vmem %s1, 7
  %85 = vst.msk [vmem:[%s84] ss:$16 sm:$0x3] %vm83, %v82
  %s86 = scalar_lea.vmem %s1, 7
  %87 = vst.msk [vmem:[%s86] ss:$16 sm:$0xc] %vm83, %v82
  %s88 = scalar_lea.vmem %s1, 7
  %89 = vst.msk [vmem:[%s88] ss:$16 sm:$0x30] %vm83, %v82
  %s90 = scalar_lea.vmem %s1, 7
  %91 = vst.msk [vmem:[%s90] ss:$16 sm:$0xc0] %vm83, %v82
  %v92 = vld [vmem:[%s0] sm:$0xff]
  %93 = vrot.lane.b32.xlu0 %v92, 120
  %v94 = vpop.permute.xlu0 %93
  %vm95 = vcmask 7168
  %s96 = scalar_lea.vmem %s1, 8
  %97 = vst.msk [vmem:[%s96] ss:$16 sm:$0x3] %vm95, %v94
  %s98 = scalar_lea.vmem %s1, 8
  %99 = vst.msk [vmem:[%s98] ss:$16 sm:$0xc] %vm95, %v94
  %s100 = scalar_lea.vmem %s1, 8
  %101 = vst.msk [vmem:[%s100] ss:$16 sm:$0x30] %vm95, %v94
  %s102 = scalar_lea.vmem %s1, 8
  %103 = vst.msk [vmem:[%s102] ss:$16 sm:$0xc0] %vm95, %v94
  %v104 = vld [vmem:[%s0] sm:$0xff]
  %105 = vrot.lane.b32.xlu0 %v104, 119
  %v106 = vpop.permute.xlu0 %105
  %vm107 = vcmask 7168
  %s108 = scalar_lea.vmem %s1, 9
  %109 = vst.msk [vmem:[%s108] ss:$16 sm:$0x3] %vm107, %v106
  %s110 = scalar_lea.vmem %s1, 9
  %111 = vst.msk [vmem:[%s110] ss:$16 sm:$0xc] %vm107, %v106
  %s112 = scalar_lea.vmem %s1, 9
  %113 = vst.msk [vmem:[%s112] ss:$16 sm:$0x30] %vm107, %v106
  %s114 = scalar_lea.vmem %s1, 9
  %115 = vst.msk [vmem:[%s114] ss:$16 sm:$0xc0] %vm107, %v106
  %v116 = vld [vmem:[%s0] sm:$0xff]
  %117 = vrot.lane.b32.xlu0 %v116, 118
  %v118 = vpop.permute.xlu0 %117
  %vm119 = vcmask 7168
  %s120 = scalar_lea.vmem %s1, 10
  %121 = vst.msk [vmem:[%s120] ss:$16 sm:$0x3] %vm119, %v118
  %s122 = scalar_lea.vmem %s1, 10
  %123 = vst.msk [vmem:[%s122] ss:$16 sm:$0xc] %vm119, %v118
  %s124 = scalar_lea.vmem %s1, 10
  %125 = vst.msk [vmem:[%s124] ss:$16 sm:$0x30] %vm119, %v118
  %s126 = scalar_lea.vmem %s1, 10
  %127 = vst.msk [vmem:[%s126] ss:$16 sm:$0xc0] %vm119, %v118
  %v128 = vld [vmem:[%s0] sm:$0xff]
  %129 = vrot.lane.b32.xlu0 %v128, 117
  %v130 = vpop.permute.xlu0 %129
  %vm131 = vcmask 7168
  %s132 = scalar_lea.vmem %s1, 11
  %133 = vst.msk [vmem:[%s132] ss:$16 sm:$0x3] %vm131, %v130
  %s134 = scalar_lea.vmem %s1, 11
  %135 = vst.msk [vmem:[%s134] ss:$16 sm:$0xc] %vm131, %v130
  %s136 = scalar_lea.vmem %s1, 11
  %137 = vst.msk [vmem:[%s136] ss:$16 sm:$0x30] %vm131, %v130
  %s138 = scalar_lea.vmem %s1, 11
  %139 = vst.msk [vmem:[%s138] ss:$16 sm:$0xc0] %vm131, %v130
  %v140 = vld [vmem:[%s0] sm:$0xff]
  %141 = vrot.lane.b32.xlu0 %v140, 116
  %v142 = vpop.permute.xlu0 %141
  %vm143 = vcmask 7168
  %s144 = scalar_lea.vmem %s1, 12
  %145 = vst.msk [vmem:[%s144] ss:$16 sm:$0x3] %vm143, %v142
  %s146 = scalar_lea.vmem %s1, 12
  %147 = vst.msk [vmem:[%s146] ss:$16 sm:$0xc] %vm143, %v142
  %s148 = scalar_lea.vmem %s1, 12
  %149 = vst.msk [vmem:[%s148] ss:$16 sm:$0x30] %vm143, %v142
  %s150 = scalar_lea.vmem %s1, 12
  %151 = vst.msk [vmem:[%s150] ss:$16 sm:$0xc0] %vm143, %v142
  %v152 = vld [vmem:[%s0] sm:$0xff]
  %153 = vrot.lane.b32.xlu0 %v152, 115
  %v154 = vpop.permute.xlu0 %153
  %vm155 = vcmask 7168
  %s156 = scalar_lea.vmem %s1, 13
  %157 = vst.msk [vmem:[%s156] ss:$16 sm:$0x3] %vm155, %v154
  %s158 = scalar_lea.vmem %s1, 13
  %159 = vst.msk [vmem:[%s158] ss:$16 sm:$0xc] %vm155, %v154
  %s160 = scalar_lea.vmem %s1, 13
  %161 = vst.msk [vmem:[%s160] ss:$16 sm:$0x30] %vm155, %v154
  %s162 = scalar_lea.vmem %s1, 13
  %163 = vst.msk [vmem:[%s162] ss:$16 sm:$0xc0] %vm155, %v154
  %v164 = vld [vmem:[%s0] sm:$0xff]
  %165 = vrot.lane.b32.xlu0 %v164, 114
  %v166 = vpop.permute.xlu0 %165
  %vm167 = vcmask 7168
  %s168 = scalar_lea.vmem %s1, 14
  %169 = vst.msk [vmem:[%s168] ss:$16 sm:$0x3] %vm167, %v166
  %s170 = scalar_lea.vmem %s1, 14
  %171 = vst.msk [vmem:[%s170] ss:$16 sm:$0xc] %vm167, %v166
  %s172 = scalar_lea.vmem %s1, 14
  %173 = vst.msk [vmem:[%s172] ss:$16 sm:$0x30] %vm167, %v166
  %s174 = scalar_lea.vmem %s1, 14
  %175 = vst.msk [vmem:[%s174] ss:$16 sm:$0xc0] %vm167, %v166
  %v176 = vld [vmem:[%s0] sm:$0xff]
  %177 = vrot.lane.b32.xlu0 %v176, 113
  %v178 = vpop.permute.xlu0 %177
  %vm179 = vcmask 7168
  %s180 = scalar_lea.vmem %s1, 15
  %181 = vst.msk [vmem:[%s180] ss:$16 sm:$0x3] %vm179, %v178
  %s182 = scalar_lea.vmem %s1, 15
  %183 = vst.msk [vmem:[%s182] ss:$16 sm:$0xc] %vm179, %v178
  %s184 = scalar_lea.vmem %s1, 15
  %185 = vst.msk [vmem:[%s184] ss:$16 sm:$0x30] %vm179, %v178
  %s186 = scalar_lea.vmem %s1, 15
  %187 = vst.msk [vmem:[%s186] ss:$16 sm:$0xc0] %vm179, %v178

// kernel: cleegn2vec_forward.1
$region0: #{cleegn2vec_forward.1}
  #allocation0 [shape = 'u32[]', space=smem, size = 0x4, offset = 0x4, fixed_abs, tag = 'smem constant byte address 0x4 - core index']
  #allocation1 [shape = 'u32[72,128]{1,0:T(1,128)}', space=vmem, size = 0x9000, scoped, tag = 'internal scratch']
  %s0 = inlined_call_operand.vmem [shape: f32[4,1,8,128], index: 0, kind: input, shape index: {}]
  %s1 = inlined_call_operand.vmem [shape: f32[4,1,256], index: 1, kind: input, shape index: {}]
  %s2 = inlined_call_operand.vmem [shape: f32[128,32], index: 2, kind: input, shape index: {}]
  %s3 = inlined_call_operand.vmem [shape: f32[128,256], index: 3, kind: input, shape index: {}]
  %s4 = inlined_call_operand.vmem [shape: f32[4,128,128], index: 4, kind: input, shape index: {}]
  %s5 = inlined_call_operand.vmem [shape: f32[128,1], index: 5, kind: input, shape index: {}]
  %s6 = inlined_call_operand.vmem [shape: f32[8,128], index: 6, kind: input, shape index: {}]
  %s7 = inlined_call_operand.vmem [shape: f32[8,1], index: 7, kind: input, shape index: {}]
  %s8 = inlined_call_operand.hbm [shape: f32[4,1,8,128], index: 8, kind: output, shape index: {0}]
  %s9 = inlined_call_operand.hbm [shape: f32[4,128,128], index: 9, kind: output, shape index: {1}]
  %10 = xla_tuple %s8, %s9
  %s11 = sld [smem:[#allocation0]]
  $region73: #{cleegn2vec_forward.1} parent=0
    _
  %s13 = ssub.s32 1, %s11
  %s14 = scalar_select 0, %s13, %s11
  $region1: #{cleegn2vec_forward.1} parent=0
    #allocation2 [shape = 'u8[16384]{0}', space=vmem, size = 0x4000, scoped, tag = 'output window, operand 0']
    #allocation3 [shape = 's32[2]{0}', space=sflag, size = 0x8, scoped, tag = 'scoped memory for cleegn2vec_forward.1']
    #allocation4 [shape = 'u8[262144]{0}', space=vmem, size = 0x40000, scoped, tag = 'output window, operand 1']
    #allocation5 [shape = 's32[2]{0}', space=sflag, size = 0x8, scoped, tag = 'scoped memory for cleegn2vec_forward.1']
    %15 = vsyncpa [#allocation3], 0
    %s16 = scalar_lea.sflag [#allocation3], 1
    %17 = vsyncpa %s16, 0
    %18 = vsyncpa [#allocation5], 0
    %s19 = scalar_lea.sflag [#allocation5], 1
    %20 = vsyncpa %s19, 0
    loop: start=0, step=1, limit=4
    $region2: #{cleegn2vec_forward.1} parent=1 // loop_pre_header
      _
    $region3: #{cleegn2vec_forward.1} parent=1 // loop_header
      %s22 = sphi 0, %s26
      %p23 = scmp.ge.s32.totalorder %s22, 4
      %s32 = sphi 0, %s34
      %s35 = sphi 0, %s32
      %s36 = sphi 0, %s35
      %s52 = sphi 0, %s36
      %s56 = sphi 0, %s56
      %s58 = sphi 0, %s56
      %s59 = sphi 0, %s58
      %s73 = sphi 0, %s59
      %s77 = sphi 0, %s77
      %s79 = sphi 0, %s77
      %s80 = sphi 0, %s79
      %s94 = sphi 0, %s80
      %s98 = sphi 0, %s98
      %s100 = sphi 0, %s98
      %s101 = sphi 0, %s100
      %s115 = sphi 0, %s101
      %s119 = sphi 0, %s119
      %s121 = sphi 0, %s119
      %s122 = sphi 0, %s121
      %s136 = sphi 0, %s122
      %s140 = sphi 0, %s140
      %s142 = sphi 0, %s140
      %s143 = sphi 0, %s142
      %s157 = sphi 0, %s143
      %s161 = sphi 0, %s161
      %s163 = sphi 0, %s161
      %s164 = sphi 0, %s163
      %s178 = sphi 0, %s164
      %s182 = sphi 0, %s182
      %s184 = sphi 0, %s182
      %s185 = sphi 0, %s184
      %s199 = sphi 0, %s185
      %s205 = sphi 0, %s207
      %s208 = sphi 0, %s205
      %s209 = sphi 0, %s208
      %s225 = sphi 0, %s209
      %s231 = sphi 0, %s233
      %s234 = sphi 0, %s231
      %s235 = sphi 0, %s234
      %s251 = sphi 0, %s235
    $region4: #{cleegn2vec_forward.1} parent=1 // loop_header_branch
      %25 = sbr.rel (%p23) target = $region8
    $region5: #{cleegn2vec_forward.1} parent=1 // loop_body
      %s27 = ssub.s32 %s22, 1
      %s28 = ssub.s32 %s22, 2
      %s29 = sadd.s32 %s22, 1
      %s30 = ssub.s32 %s22, %s29
      %p31 = scmp.eq.s32.totalorder %s30, 0
      %s33 = sadd.s32 %s32, 1
      %s34 = scalar_select %p31, %s32, %s33
      %p37 = pneg %p31
      %p38 = scmp.eq.s32.totalorder %s22, 1
      %p39 = por %p37, %p38
      %p40 = scmp.ne.s32.totalorder %s32, %s35
      %p41 = scmp.eq.s32.totalorder %s22, 0
      %p42 = por %p40, %p41
      %p43 = scmp.ne.s32.totalorder %s32, %s35
      %p44 = scmp.eq.s32.totalorder %s27, 1
      %p45 = por %p43, %p44
      %p46 = scmp.ne.s32.totalorder %s35, %s36
      %p47 = scmp.eq.s32.totalorder %s27, 0
      %p48 = por %p46, %p47
      %p49 = scmp.ne.s32.totalorder %s35, %s36
      %p50 = scmp.eq.s32.totalorder %s28, 1
      %p51 = por %p49, %p50
      %p53 = scmp.ne.s32.totalorder %s36, %s52
      %p54 = scmp.eq.s32.totalorder %s28, 0
      %p55 = por %p53, %p54
      %s57 = sadd.s32 %s56, 1
      %p60 = scmp.eq.s32.totalorder %s22, 1
      %p61 = scmp.ne.s32.totalorder %s56, %s58
      %p62 = scmp.eq.s32.totalorder %s22, 0
      %p63 = por %p61, %p62
      %p64 = scmp.ne.s32.totalorder %s56, %s58
      %p65 = scmp.eq.s32.totalorder %s27, 1
      %p66 = por %p64, %p65
      %p67 = scmp.ne.s32.totalorder %s58, %s59
      %p68 = scmp.eq.s32.totalorder %s27, 0
      %p69 = por %p67, %p68
      %p70 = scmp.ne.s32.totalorder %s58, %s59
      %p71 = scmp.eq.s32.totalorder %s28, 1
      %p72 = por %p70, %p71
      %p74 = scmp.ne.s32.totalorder %s59, %s73
      %p75 = scmp.eq.s32.totalorder %s28, 0
      %p76 = por %p74, %p75
      %s78 = sadd.s32 %s77, 1
      %p81 = scmp.eq.s32.totalorder %s22, 1
      %p82 = scmp.ne.s32.totalorder %s77, %s79
      %p83 = scmp.eq.s32.totalorder %s22, 0
      %p84 = por %p82, %p83
      %p85 = scmp.ne.s32.totalorder %s77, %s79
      %p86 = scmp.eq.s32.totalorder %s27, 1
      %p87 = por %p85, %p86
      %p88 = scmp.ne.s32.totalorder %s79, %s80
      %p89 = scmp.eq.s32.totalorder %s27, 0
      %p90 = por %p88, %p89
      %p91 = scmp.ne.s32.totalorder %s79, %s80
      %p92 = scmp.eq.s32.totalorder %s28, 1
      %p93 = por %p91, %p92
      %p95 = scmp.ne.s32.totalorder %s80, %s94
      %p96 = scmp.eq.s32.totalorder %s28, 0
      %p97 = por %p95, %p96
      %s99 = sadd.s32 %s98, 1
      %p102 = scmp.eq.s32.totalorder %s22, 1
      %p103 = scmp.ne.s32.totalorder %s98, %s100
      %p104 = scmp.eq.s32.totalorder %s22, 0
      %p105 = por %p103, %p104
      %p106 = scmp.ne.s32.totalorder %s98, %s100
      %p107 = scmp.eq.s32.totalorder %s27, 1
      %p108 = por %p106, %p107
      %p109 = scmp.ne.s32.totalorder %s100, %s101
      %p110 = scmp.eq.s32.totalorder %s27, 0
      %p111 = por %p109, %p110
      %p112 = scmp.ne.s32.totalorder %s100, %s101
      %p113 = scmp.eq.s32.totalorder %s28, 1
      %p114 = por %p112, %p113
      %p116 = scmp.ne.s32.totalorder %s101, %s115
      %p117 = scmp.eq.s32.totalorder %s28, 0
      %p118 = por %p116, %p117
      %s120 = sadd.s32 %s119, 1
      %p123 = scmp.eq.s32.totalorder %s22, 1
      %p124 = scmp.ne.s32.totalorder %s119, %s121
      %p125 = scmp.eq.s32.totalorder %s22, 0
      %p126 = por %p124, %p125
      %p127 = scmp.ne.s32.totalorder %s119, %s121
      %p128 = scmp.eq.s32.totalorder %s27, 1
      %p129 = por %p127, %p128
      %p130 = scmp.ne.s32.totalorder %s121, %s122
      %p131 = scmp.eq.s32.totalorder %s27, 0
      %p132 = por %p130, %p131
      %p133 = scmp.ne.s32.totalorder %s121, %s122
      %p134 = scmp.eq.s32.totalorder %s28, 1
      %p135 = por %p133, %p134
      %p137 = scmp.ne.s32.totalorder %s122, %s136
      %p138 = scmp.eq.s32.totalorder %s28, 0
      %p139 = por %p137, %p138
      %s141 = sadd.s32 %s140, 1
      %p144 = scmp.eq.s32.totalorder %s22, 1
      %p145 = scmp.ne.s32.totalorder %s140, %s142
      %p146 = scmp.eq.s32.totalorder %s22, 0
      %p147 = por %p145, %p146
      %p148 = scmp.ne.s32.totalorder %s140, %s142
      %p149 = scmp.eq.s32.totalorder %s27, 1
      %p150 = por %p148, %p149
      %p151 = scmp.ne.s32.totalorder %s142, %s143
      %p152 = scmp.eq.s32.totalorder %s27, 0
      %p153 = por %p151, %p152
      %p154 = scmp.ne.s32.totalorder %s142, %s143
      %p155 = scmp.eq.s32.totalorder %s28, 1
      %p156 = por %p154, %p155
      %p158 = scmp.ne.s32.totalorder %s143, %s157
      %p159 = scmp.eq.s32.totalorder %s28, 0
      %p160 = por %p158, %p159
      %s162 = sadd.s32 %s161, 1
      %p165 = scmp.eq.s32.totalorder %s22, 1
      %p166 = scmp.ne.s32.totalorder %s161, %s163
      %p167 = scmp.eq.s32.totalorder %s22, 0
      %p168 = por %p166, %p167
      %p169 = scmp.ne.s32.totalorder %s161, %s163
      %p170 = scmp.eq.s32.totalorder %s27, 1
      %p171 = por %p169, %p170
      %p172 = scmp.ne.s32.totalorder %s163, %s164
      %p173 = scmp.eq.s32.totalorder %s27, 0
      %p174 = por %p172, %p173
      %p175 = scmp.ne.s32.totalorder %s163, %s164
      %p176 = scmp.eq.s32.totalorder %s28, 1
      %p177 = por %p175, %p176
      %p179 = scmp.ne.s32.totalorder %s164, %s178
      %p180 = scmp.eq.s32.totalorder %s28, 0
      %p181 = por %p179, %p180
      %s183 = sadd.s32 %s182, 1
      %p186 = scmp.eq.s32.totalorder %s22, 1
      %p187 = scmp.ne.s32.totalorder %s182, %s184
      %p188 = scmp.eq.s32.totalorder %s22, 0
      %p189 = por %p187, %p188
      %p190 = scmp.ne.s32.totalorder %s182, %s184
      %p191 = scmp.eq.s32.totalorder %s27, 1
      %p192 = por %p190, %p191
      %p193 = scmp.ne.s32.totalorder %s184, %s185
      %p194 = scmp.eq.s32.totalorder %s27, 0
      %p195 = por %p193, %p194
      %p196 = scmp.ne.s32.totalorder %s184, %s185
      %p197 = scmp.eq.s32.totalorder %s28, 1
      %p198 = por %p196, %p197
      %p200 = scmp.ne.s32.totalorder %s185, %s199
      %p201 = scmp.eq.s32.totalorder %s28, 0
      %p202 = por %p200, %p201
      %s203 = ssub.s32 %s22, %s29
      %p204 = scmp.eq.s32.totalorder %s203, 0
      %s206 = sadd.s32 %s205, 1
      %s207 = scalar_select %p204, %s205, %s206
      %p210 = pneg %p204
      %p211 = scmp.eq.s32.totalorder %s22, 1
      %p212 = por %p210, %p211
      %p213 = scmp.ne.s32.totalorder %s205, %s208
      %p214 = scmp.eq.s32.totalorder %s22, 0
      %p215 = por %p213, %p214
      %p216 = scmp.ne.s32.totalorder %s205, %s208
      %p217 = scmp.eq.s32.totalorder %s27, 1
      %p218 = por %p216, %p217
      %p219 = scmp.ne.s32.totalorder %s208, %s209
      %p220 = scmp.eq.s32.totalorder %s27, 0
      %p221 = por %p219, %p220
      %p222 = scmp.ne.s32.totalorder %s208, %s209
      %p223 = scmp.eq.s32.totalorder %s28, 1
      %p224 = por %p222, %p223
      %p226 = scmp.ne.s32.totalorder %s209, %s225
      %p227 = scmp.eq.s32.totalorder %s28, 0
      %p228 = por %p226, %p227
      %s229 = ssub.s32 %s22, %s29
      %p230 = scmp.eq.s32.totalorder %s229, 0
      %s232 = sadd.s32 %s231, 1
      %s233 = scalar_select %p230, %s231, %s232
      %p236 = pneg %p230
      %p237 = scmp.eq.s32.totalorder %s22, 1
      %p238 = por %p236, %p237
      %p239 = scmp.ne.s32.totalorder %s231, %s234
      %p240 = scmp.eq.s32.totalorder %s22, 0
      %p241 = por %p239, %p240
      %p242 = scmp.ne.s32.totalorder %s231, %s234
      %p243 = scmp.eq.s32.totalorder %s27, 1
      %p244 = por %p242, %p243
      %p245 = scmp.ne.s32.totalorder %s234, %s235
      %p246 = scmp.eq.s32.totalorder %s27, 0
      %p247 = por %p245, %p246
      %p248 = scmp.ne.s32.totalorder %s234, %s235
      %p249 = scmp.eq.s32.totalorder %s28, 1
      %p250 = por %p248, %p249
      %p252 = scmp.ne.s32.totalorder %s235, %s251
      %p253 = scmp.eq.s32.totalorder %s28, 0
      %p254 = por %p252, %p253
      %p255 = scmp.le.s32.totalorder 1, %s22
      %p256 = scmp.lt.s32.totalorder %s22, 3
      %p257 = pnand %p255, %p256
      %p258 = pneg %p257
      // Predicated region
      $region9: #{cleegn2vec_forward.1} parent=5 // pred_check
        _
      $region10: #{cleegn2vec_forward.1} parent=5 // pred_check_branch
        %260 = sbr.rel (%p257) target = $region12
      $region11: #{cleegn2vec_forward.1} parent=5 // pred_region
        %s261 = ssub.s32 %s22, 1
        // Predicated region
        $region13: #{cleegn2vec_forward.1} parent=11 // pred_check
          %p262 = pneg %p69
        $region14: #{cleegn2vec_forward.1} parent=11 // pred_check_branch
          %264 = sbr.rel (%p262) target = $region16
        $region15: #{cleegn2vec_forward.1} parent=11 // pred_region
          _
        $region16: #{cleegn2vec_forward.1} parent=11 // pred_fallthru
          _
        // Predicated region
        $region17: #{cleegn2vec_forward.1} parent=11 // pred_check
          %p265 = pneg %p90
        $region18: #{cleegn2vec_forward.1} parent=11 // pred_check_branch
          %267 = sbr.rel (%p265) target = $region20
        $region19: #{cleegn2vec_forward.1} parent=11 // pred_region
          _
        $region20: #{cleegn2vec_forward.1} parent=11 // pred_fallthru
          _
        // Predicated region
        $region21: #{cleegn2vec_forward.1} parent=11 // pred_check
          %p268 = pneg %p111
        $region22: #{cleegn2vec_forward.1} parent=11 // pred_check_branch
          %270 = sbr.rel (%p268) target = $region24
        $region23: #{cleegn2vec_forward.1} parent=11 // pred_region
          _
        $region24: #{cleegn2vec_forward.1} parent=11 // pred_fallthru
          _
        // Predicated region
        $region25: #{cleegn2vec_forward.1} parent=11 // pred_check
          %p271 = pneg %p132
        $region26: #{cleegn2vec_forward.1} parent=11 // pred_check_branch
          %273 = sbr.rel (%p271) target = $region28
        $region27: #{cleegn2vec_forward.1} parent=11 // pred_region
          _
        $region28: #{cleegn2vec_forward.1} parent=11 // pred_fallthru
          _
        // Predicated region
        $region29: #{cleegn2vec_forward.1} parent=11 // pred_check
          %p274 = pneg %p153
        $region30: #{cleegn2vec_forward.1} parent=11 // pred_check_branch
          %276 = sbr.rel (%p274) target = $region32
        $region31: #{cleegn2vec_forward.1} parent=11 // pred_region
          _
        $region32: #{cleegn2vec_forward.1} parent=11 // pred_fallthru
          _
        // Predicated region
        $region33: #{cleegn2vec_forward.1} parent=11 // pred_check
          %p277 = pneg %p174
        $region34: #{cleegn2vec_forward.1} parent=11 // pred_check_branch
          %279 = sbr.rel (%p277) target = $region36
        $region35: #{cleegn2vec_forward.1} parent=11 // pred_region
          _
        $region36: #{cleegn2vec_forward.1} parent=11 // pred_fallthru
          _
        // Predicated region
        $region37: #{cleegn2vec_forward.1} parent=11 // pred_check
          %p280 = pneg %p195
        $region38: #{cleegn2vec_forward.1} parent=11 // pred_check_branch
          %282 = sbr.rel (%p280) target = $region40
        $region39: #{cleegn2vec_forward.1} parent=11 // pred_region
          _
        $region40: #{cleegn2vec_forward.1} parent=11 // pred_fallthru
          _
      $region12: #{cleegn2vec_forward.1} parent=5 // pred_fallthru
        _
      %p283 = scmp.lt.s32.totalorder %s22, 2
      // Predicated region
      $region41: #{cleegn2vec_forward.1} parent=5 // pred_check
        %p284 = pneg %p283
      $region42: #{cleegn2vec_forward.1} parent=5 // pred_check_branch
        %286 = sbr.rel (%p284) target = $region44
      $region43: #{cleegn2vec_forward.1} parent=5 // pred_region
        // Predicated region
        $region45: #{cleegn2vec_forward.1} parent=43 // pred_check
          %p287 = pneg %p42
        $region46: #{cleegn2vec_forward.1} parent=43 // pred_check_branch
          %289 = sbr.rel (%p287) target = $region48
        $region47: #{cleegn2vec_forward.1} parent=43 // pred_region
          %s290 = smul.u32 2, %s22
          %p291 = scmp.lt.s32.totalorder %s290, 3
          %s292 = scalar_select %p291, %s290, 3
          %s293 = smul.addr %s292, 8
          %s294 = scalar_lea.vmem %s0, %s293
          %s295 = smul.u32 2, %s22
        $region48: #{cleegn2vec_forward.1} parent=43 // pred_fallthru
          _
      $region44: #{cleegn2vec_forward.1} parent=5 // pred_fallthru
        _
      %p296 = scmp.le.s32.totalorder 1, %s22
      %p297 = scmp.lt.s32.totalorder %s22, 3
      %p298 = pnand %p296, %p297
      %p299 = pneg %p298
      // Predicated region
      $region49: #{cleegn2vec_forward.1} parent=5 // pred_check
        _
      $region50: #{cleegn2vec_forward.1} parent=5 // pred_check_branch
        %301 = sbr.rel (%p298) target = $region52
      $region51: #{cleegn2vec_forward.1} parent=5 // pred_region
        %s302 = ssub.s32 %s22, 1
        %s303 = smul.u32 2, %s27
        %p304 = scmp.lt.s32.totalorder %s303, 3
        %s305 = scalar_select %p304, %s303, 3
        %s306 = smul.addr %s305, 8
        %s307 = scalar_lea.vmem %s0, %s306
        %p308 = pneg %p48
        %p309 = pneg %p45
        %p310 = pneg %p69
        %p311 = pneg %p66
        %p312 = pneg %p90
        %p313 = pneg %p87
        %p314 = pneg %p111
        %p315 = pneg %p108
        %p316 = pneg %p132
        %p317 = pneg %p129
        %p318 = pneg %p153
        %p319 = pneg %p150
        %p320 = pneg %p174
        %p321 = pneg %p171
        %p322 = pneg %p195
        %p323 = pneg %p192
        %p324 = pneg %p221
        %p325 = pneg %p218
        %s326 = sand.u32 %s208, 1
        %s327 = scalar_lea.sflag [#allocation3], %s326
        %s328 = sand.u32 %s208, 1
        %s329 = smul.addr %s328, 16
        %s330 = scalar_lea.vmem [#allocation2], %s329
        %p331 = pneg %p247
        %p332 = pneg %p244
        %s333 = sand.u32 %s234, 1
        %s334 = scalar_lea.sflag [#allocation5], %s333
        %s335 = sand.u32 %s234, 1
        %s336 = smul.addr %s335, 256
        %s337 = scalar_lea.vmem [#allocation4], %s336
        %s338 = smul.u32 2, %s27
        %p339 = scmp.lt.s32.totalorder %s338, 3
        %s340 = scalar_select %p339, %s338, 3
        %s341 = smul.addr %s340, 8
        %s342 = scalar_lea.vmem %s0, %s341
        %s343 = smul.u32 2, %s27
        %s344 = smul.u32 2, %s27
        %s345 = smul.u32 2, %s27
        %v346 = vld [vmem:[%s342] sm:$0xff]
        %s347 = scalar_lea.vmem %s342, 8
        %v348 = vld [vmem:[%s347] sm:$0xff]
        %349 = vrot.lane.b32.xlu0 %v346, 1
        %v350 = vpop.permute.xlu0 %349
        %351 = vrot.lane.b32.xlu0 %v348, 1
        %v352 = vpop.permute.xlu0 %351
        %v353 = vlaneseq
        %v354 = vand.u32 %v353, 127
        %vm355 = vcmp.lt.s32.totalorder %v354, 1
        %v356 = vsel %vm355, %v350, %v352
        %v357 = vsel %vm355, %v352, %v350
        %v358 = vld [vmem:[%s1] sm:$0x3]
        %v360 = vperm.slane %v358, 0
        %v361 = vperm.slane %v358, 1
        %v364 = vmul.f32 %v357, %v360
        %v365 = vmul.f32 %v356, %v361
        %366 = vrot.lane.b32.xlu0 %v346, 127
        %v367 = vpop.permute.xlu0 %366
        %368 = vrot.lane.b32.xlu0 %v348, 127
        %v369 = vpop.permute.xlu0 %368
        %vm370 = vcmp.lt.s32.totalorder %v354, 127
        %v371 = vsel %vm370, %v367, %v369
        %v372 = vsel %vm370, %v369, %v367
        %s373 = scalar_lea.vmem %s1, 4
        %v374 = vld [vmem:[%s373] sm:$0x3]
        %v376 = vperm.slane %v374, 0
        %v377 = vperm.slane %v374, 1
        %v380 = vmul.f32 %v371, %v376
        %v381 = vmul.f32 %v372, %v377
        %382 = vrot.lane.b32.xlu0 %v346, 126
        %v383 = vpop.permute.xlu0 %382
        %384 = vrot.lane.b32.xlu0 %v348, 126
        %v385 = vpop.permute.xlu0 %384
        %vm386 = vcmp.lt.s32.totalorder %v354, 126
        %v387 = vsel %vm386, %v383, %v385
        %v388 = vsel %vm386, %v385, %v383
        %s389 = scalar_lea.vmem %s1, 6
        %v390 = vld [vmem:[%s389] sm:$0x3]
        %v392 = vperm.slane %v390, 0
        %v393 = vperm.slane %v390, 1
        %v396 = vmul.f32 %v387, %v392
        %v397 = vmul.f32 %v388, %v393
        %v398 = vld [vmem:[%s2] sm:$0xff]
        %v399 = vld [vmem:[%s2 + $0x8] sm:$0xff]
        %v400 = vld [vmem:[%s2 + $0x10] sm:$0xff]
        %v401 = vld [vmem:[%s2 + $0x18] sm:$0xff]
        %v402 = vld [vmem:[%s2 + $0x20] sm:$0xff]
        %v403 = vld [vmem:[%s2 + $0x28] sm:$0xff]
        %v404 = vld [vmem:[%s2 + $0x30] sm:$0xff]
        %v405 = vld [vmem:[%s2 + $0x38] sm:$0xff]
        %v406 = vld [vmem:[%s2 + $0x40] sm:$0xff]
        %v407 = vld [vmem:[%s2 + $0x48] sm:$0xff]
        %v408 = vld [vmem:[%s2 + $0x50] sm:$0xff]
        %v409 = vld [vmem:[%s2 + $0x58] sm:$0xff]
        %v410 = vld [vmem:[%s2 + $0x60] sm:$0xff]
        %v411 = vld [vmem:[%s2 + $0x68] sm:$0xff]
        %v412 = vld [vmem:[%s2 + $0x70] sm:$0xff]
        %v413 = vld [vmem:[%s2 + $0x78] sm:$0xff]
        %v414 = vld [vmem:[%s3] sm:$0xff]
        %v415 = vld [vmem:[%s3 + $0x8] sm:$0xff]
        %v416 = vld [vmem:[%s3 + $0x10] sm:$0xff]
        %v417 = vld [vmem:[%s3 + $0x18] sm:$0xff]
        %v418 = vld [vmem:[%s3 + $0x20] sm:$0xff]
        %v419 = vld [vmem:[%s3 + $0x28] sm:$0xff]
        %v420 = vld [vmem:[%s3 + $0x30] sm:$0xff]
        %v421 = vld [vmem:[%s3 + $0x38] sm:$0xff]
        %v422 = vld [vmem:[%s3 + $0x40] sm:$0xff]
        %v423 = vld [vmem:[%s3 + $0x48] sm:$0xff]
        %v424 = vld [vmem:[%s3 + $0x50] sm:$0xff]
        %v425 = vld [vmem:[%s3 + $0x58] sm:$0xff]
        %v426 = vld [vmem:[%s3 + $0x60] sm:$0xff]
        %v427 = vld [vmem:[%s3 + $0x68] sm:$0xff]
        %v428 = vld [vmem:[%s3 + $0x70] sm:$0xff]
        %v429 = vld [vmem:[%s3 + $0x78] sm:$0xff]
        %v430 = vld [vmem:[%s3 + $0x80] sm:$0xff]
        %v431 = vld [vmem:[%s3 + $0x88] sm:$0xff]
        %v432 = vld [vmem:[%s3 + $0x90] sm:$0xff]
        %v433 = vld [vmem:[%s3 + $0x98] sm:$0xff]
        %v434 = vld [vmem:[%s3 + $0xa0] sm:$0xff]
        %v435 = vld [vmem:[%s3 + $0xa8] sm:$0xff]
        %v436 = vld [vmem:[%s3 + $0xb0] sm:$0xff]
        %v437 = vld [vmem:[%s3 + $0xb8] sm:$0xff]
        %v438 = vld [vmem:[%s3 + $0xc0] sm:$0xff]
        %v439 = vld [vmem:[%s3 + $0xc8] sm:$0xff]
        %v440 = vld [vmem:[%s3 + $0xd0] sm:$0xff]
        %v441 = vld [vmem:[%s3 + $0xd8] sm:$0xff]
        %v442 = vld [vmem:[%s3 + $0xe0] sm:$0xff]
        %v443 = vld [vmem:[%s3 + $0xe8] sm:$0xff]
        %v444 = vld [vmem:[%s3 + $0xf0] sm:$0xff]
        %v445 = vld [vmem:[%s3 + $0xf8] sm:$0xff]
        %vm446 = vcmask 261120
        %v448 = vsel %vm446, %v398, 0
        %v451 = vsel %vm446, %v399, 0
        %v454 = vsel %vm446, %v400, 0
        %v457 = vsel %vm446, %v401, 0
        %v460 = vsel %vm446, %v402, 0
        %v463 = vsel %vm446, %v403, 0
        %v466 = vsel %vm446, %v404, 0
        %v469 = vsel %vm446, %v405, 0
        %v472 = vsel %vm446, %v406, 0
        %v475 = vsel %vm446, %v407, 0
        %v478 = vsel %vm446, %v408, 0
        %v481 = vsel %vm446, %v409, 0
        %v484 = vsel %vm446, %v410, 0
        %v487 = vsel %vm446, %v411, 0
        %v490 = vsel %vm446, %v412, 0
        %v493 = vsel %vm446, %v413, 0
        %495 = vmatpush.msra.mxu0 0.0
        %496 = vmatpush.msra.mxu0 0.0
        %497 = vmatpush.msra.mxu0 0.0
        %498 = vmatpush.msra.mxu0 0.0
        %499 = vmatpush.msra.mxu0 0.0
        %500 = vmatpush.msra.mxu0 0.0
        %501 = vmatpush.msra.mxu0 0.0
        %502 = vmatpush.msra.mxu0 0.0
        %503 = vmatpush.msra.mxu0 0.0
        %504 = vmatpush.msra.mxu0 0.0
        %505 = vmatpush.msra.mxu0 0.0
        %506 = vmatpush.msra.mxu0 0.0
        %507 = vmatpush.msra.mxu0 %v396
        %508 = vmatpush.msra.mxu0 %v380
        %509 = vmatpush.msra.mxu0 %v346
        %510 = vmatpush.msra.mxu0 %v364
        %511 = vmatmul.f32.gmra.mxu0 %v448
        %v512 = vpop.f32.mrf.mxu0
        %v513 = vadd.f32 %v414, %v512
        %514 = vmatmul.f32.gmra.mxu0 %v451
        %v515 = vpop.f32.mrf.mxu0
        %v516 = vadd.f32 %v416, %v515
        %517 = vmatmul.f32.gmra.mxu0 %v454
        %v518 = vpop.f32.mrf.mxu0
        %v519 = vadd.f32 %v418, %v518
        %520 = vmatmul.f32.gmra.mxu0 %v457
        %v521 = vpop.f32.mrf.mxu0
        %v522 = vadd.f32 %v420, %v521
        %523 = vmatmul.f32.gmra.mxu0 %v460
        %v524 = vpop.f32.mrf.mxu0
        %v525 = vadd.f32 %v422, %v524
        %526 = vmatmul.f32.gmra.mxu0 %v463
        %v527 = vpop.f32.mrf.mxu0
        %v528 = vadd.f32 %v424, %v527
        %529 = vmatmul.f32.gmra.mxu0 %v466
        %v530 = vpop.f32.mrf.mxu0
        %v531 = vadd.f32 %v426, %v530
        %532 = vmatmul.f32.gmra.mxu0 %v469
        %v533 = vpop.f32.mrf.mxu0
        %v534 = vadd.f32 %v428, %v533
        %535 = vmatmul.f32.gmra.mxu0 %v472
        %v536 = vpop.f32.mrf.mxu0
        %v537 = vadd.f32 %v430, %v536
        %538 = vmatmul.f32.gmra.mxu0 %v475
        %v539 = vpop.f32.mrf.mxu0
        %v540 = vadd.f32 %v432, %v539
        %541 = vmatmul.f32.gmra.mxu0 %v478
        %v542 = vpop.f32.mrf.mxu0
        %v543 = vadd.f32 %v434, %v542
        %544 = vmatmul.f32.gmra.mxu0 %v481
        %v545 = vpop.f32.mrf.mxu0
        %v546 = vadd.f32 %v436, %v545
        %547 = vmatmul.f32.gmra.mxu0 %v484
        %v548 = vpop.f32.mrf.mxu0
        %v549 = vadd.f32 %v438, %v548
        %550 = vmatmul.f32.gmra.mxu0 %v487
        %v551 = vpop.f32.mrf.mxu0
        %v552 = vadd.f32 %v440, %v551
        %553 = vmatmul.f32.gmra.mxu0 %v490
        %v554 = vpop.f32.mrf.mxu0
        %v555 = vadd.f32 %v442, %v554
        %556 = vmatmul.f32.gmra.mxu0 %v493
        %v557 = vpop.f32.mrf.mxu0
        %v558 = vadd.f32 %v444, %v557
        %559 = vdwg.mxu0
        %560 = vmatpush.msra.mxu0 0.0
        %561 = vmatpush.msra.mxu0 0.0
        %562 = vmatpush.msra.mxu0 0.0
        %563 = vmatpush.msra.mxu0 0.0
        %564 = vmatpush.msra.mxu0 0.0
        %565 = vmatpush.msra.mxu0 0.0
        %566 = vmatpush.msra.mxu0 0.0
        %567 = vmatpush.msra.mxu0 0.0
        %568 = vmatpush.msra.mxu0 0.0
        %569 = vmatpush.msra.mxu0 0.0
        %570 = vmatpush.msra.mxu0 0.0
        %571 = vmatpush.msra.mxu0 0.0
        %572 = vmatpush.msra.mxu0 %v397
        %573 = vmatpush.msra.mxu0 %v381
        %574 = vmatpush.msra.mxu0 %v348
        %575 = vmatpush.msra.mxu0 %v365
        %576 = vmatmul.f32.gmra.mxu0 %v448
        %v577 = vpop.f32.mrf.mxu0
        %v578 = vadd.f32 %v415, %v577
        %579 = vmatmul.f32.gmra.mxu0 %v451
        %v580 = vpop.f32.mrf.mxu0
        %v581 = vadd.f32 %v417, %v580
        %582 = vmatmul.f32.gmra.mxu0 %v454
        %v583 = vpop.f32.mrf.mxu0
        %v584 = vadd.f32 %v419, %v583
        %585 = vmatmul.f32.gmra.mxu0 %v457
        %v586 = vpop.f32.mrf.mxu0
        %v587 = vadd.f32 %v421, %v586
        %588 = vmatmul.f32.gmra.mxu0 %v460
        %v589 = vpop.f32.mrf.mxu0
        %v590 = vadd.f32 %v423, %v589
        %591 = vmatmul.f32.gmra.mxu0 %v463
        %v592 = vpop.f32.mrf.mxu0
        %v593 = vadd.f32 %v425, %v592
        %594 = vmatmul.f32.gmra.mxu0 %v466
        %v595 = vpop.f32.mrf.mxu0
        %v596 = vadd.f32 %v427, %v595
        %597 = vmatmul.f32.gmra.mxu0 %v469
        %v598 = vpop.f32.mrf.mxu0
        %v599 = vadd.f32 %v429, %v598
        %600 = vmatmul.f32.gmra.mxu0 %v472
        %v601 = vpop.f32.mrf.mxu0
        %v602 = vadd.f32 %v431, %v601
        %603 = vmatmul.f32.gmra.mxu0 %v475
        %v604 = vpop.f32.mrf.mxu0
        %v605 = vadd.f32 %v433, %v604
        %606 = vmatmul.f32.gmra.mxu0 %v478
        %v607 = vpop.f32.mrf.mxu0
        %v608 = vadd.f32 %v435, %v607
        %609 = vmatmul.f32.gmra.mxu0 %v481
        %v610 = vpop.f32.mrf.mxu0
        %v611 = vadd.f32 %v437, %v610
        %612 = vmatmul.f32.gmra.mxu0 %v484
        %v613 = vpop.f32.mrf.mxu0
        %v614 = vadd.f32 %v439, %v613
        %615 = vmatmul.f32.gmra.mxu0 %v487
        %v616 = vpop.f32.mrf.mxu0
        %v617 = vadd.f32 %v441, %v616
        %618 = vmatmul.f32.gmra.mxu0 %v490
        %v619 = vpop.f32.mrf.mxu0
        %v620 = vadd.f32 %v443, %v619
        %621 = vmatmul.f32.gmra.mxu0 %v493
        %v622 = vpop.f32.mrf.mxu0
        %v623 = vadd.f32 %v445, %v622
        %624 = vdwg.mxu0
        %625 = vst [vmem:[%s337] sm:$0xff] %v513
        %626 = vst [vmem:[%s337 + $0x8] sm:$0xff] %v516
        %627 = vst [vmem:[%s337 + $0x10] sm:$0xff] %v519
        %628 = vst [vmem:[%s337 + $0x18] sm:$0xff] %v522
        %629 = vst [vmem:[%s337 + $0x20] sm:$0xff] %v525
        %630 = vst [vmem:[%s337 + $0x28] sm:$0xff] %v528
        %631 = vst [vmem:[%s337 + $0x30] sm:$0xff] %v531
        %632 = vst [vmem:[%s337 + $0x38] sm:$0xff] %v534
        %633 = vst [vmem:[%s337 + $0x40] sm:$0xff] %v537
        %634 = vst [vmem:[%s337 + $0x48] sm:$0xff] %v540
        %635 = vst [vmem:[%s337 + $0x50] sm:$0xff] %v543
        %636 = vst [vmem:[%s337 + $0x58] sm:$0xff] %v546
        %637 = vst [vmem:[%s337 + $0x60] sm:$0xff] %v549
        %638 = vst [vmem:[%s337 + $0x68] sm:$0xff] %v552
        %639 = vst [vmem:[%s337 + $0x70] sm:$0xff] %v555
        %640 = vst [vmem:[%s337 + $0x78] sm:$0xff] %v558
        %s641 = scalar_lea.vmem %s337, 128 [#allocation4]
        %642 = vst [vmem:[%s641] sm:$0xff] %v578
        %643 = vst [vmem:[%s641 + $0x8] sm:$0xff] %v581
        %644 = vst [vmem:[%s641 + $0x10] sm:$0xff] %v584
        %645 = vst [vmem:[%s641 + $0x18] sm:$0xff] %v587
        %646 = vst [vmem:[%s641 + $0x20] sm:$0xff] %v590
        %647 = vst [vmem:[%s641 + $0x28] sm:$0xff] %v593
        %648 = vst [vmem:[%s641 + $0x30] sm:$0xff] %v596
        %649 = vst [vmem:[%s641 + $0x38] sm:$0xff] %v599
        %650 = vst [vmem:[%s641 + $0x40] sm:$0xff] %v602
        %651 = vst [vmem:[%s641 + $0x48] sm:$0xff] %v605
        %652 = vst [vmem:[%s641 + $0x50] sm:$0xff] %v608
        %653 = vst [vmem:[%s641 + $0x58] sm:$0xff] %v611
        %654 = vst [vmem:[%s641 + $0x60] sm:$0xff] %v614
        %655 = vst [vmem:[%s641 + $0x68] sm:$0xff] %v617
        %656 = vst [vmem:[%s641 + $0x70] sm:$0xff] %v620
        %657 = vst [vmem:[%s641 + $0x78] sm:$0xff] %v623
        %v658 = vld [vmem:[%s337] sm:$0xff]
        %v659 = vld [vmem:[%s337 + $0x8] sm:$0xff]
        %v660 = vld [vmem:[%s337 + $0x10] sm:$0xff]
        %v661 = vld [vmem:[%s337 + $0x18] sm:$0xff]
        %v662 = vld [vmem:[%s337 + $0x20] sm:$0xff]
        %v663 = vld [vmem:[%s337 + $0x28] sm:$0xff]
        %v664 = vld [vmem:[%s337 + $0x30] sm:$0xff]
        %v665 = vld [vmem:[%s337 + $0x38] sm:$0xff]
        %v666 = vld [vmem:[%s337 + $0x40] sm:$0xff]
        %v667 = vld [vmem:[%s337 + $0x48] sm:$0xff]
        %v668 = vld [vmem:[%s337 + $0x50] sm:$0xff]
        %v669 = vld [vmem:[%s337 + $0x58] sm:$0xff]
        %v670 = vld [vmem:[%s337 + $0x60] sm:$0xff]
        %v671 = vld [vmem:[%s337 + $0x68] sm:$0xff]
        %v672 = vld [vmem:[%s337 + $0x70] sm:$0xff]
        %v673 = vld [vmem:[%s337 + $0x78] sm:$0xff]
        %v674 = vld [vmem:[%s641] sm:$0xff]
        %v675 = vld [vmem:[%s641 + $0x8] sm:$0xff]
        %v676 = vld [vmem:[%s641 + $0x10] sm:$0xff]
        %v677 = vld [vmem:[%s641 + $0x18] sm:$0xff]
        %v678 = vld [vmem:[%s641 + $0x20] sm:$0xff]
        %v679 = vld [vmem:[%s641 + $0x28] sm:$0xff]
        %v680 = vld [vmem:[%s641 + $0x30] sm:$0xff]
        %v681 = vld [vmem:[%s641 + $0x38] sm:$0xff]
        %v682 = vld [vmem:[%s641 + $0x40] sm:$0xff]
        %v683 = vld [vmem:[%s641 + $0x48] sm:$0xff]
        %v684 = vld [vmem:[%s641 + $0x50] sm:$0xff]
        %v685 = vld [vmem:[%s641 + $0x58] sm:$0xff]
        %v686 = vld [vmem:[%s641 + $0x60] sm:$0xff]
        %v687 = vld [vmem:[%s641 + $0x68] sm:$0xff]
        %v688 = vld [vmem:[%s641 + $0x70] sm:$0xff]
        %v689 = vld [vmem:[%s641 + $0x78] sm:$0xff]
        %v690 = vld [vmem:[%s4] sm:$0xff]
        %v691 = vld [vmem:[%s4 + $0x8] sm:$0xff]
        %v692 = vld [vmem:[%s4 + $0x10] sm:$0xff]
        %v693 = vld [vmem:[%s4 + $0x18] sm:$0xff]
        %v694 = vld [vmem:[%s4 + $0x20] sm:$0xff]
        %v695 = vld [vmem:[%s4 + $0x28] sm:$0xff]
        %v696 = vld [vmem:[%s4 + $0x30] sm:$0xff]
        %v697 = vld [vmem:[%s4 + $0x38] sm:$0xff]
        %v698 = vld [vmem:[%s4 + $0x40] sm:$0xff]
        %v699 = vld [vmem:[%s4 + $0x48] sm:$0xff]
        %v700 = vld [vmem:[%s4 + $0x50] sm:$0xff]
        %v701 = vld [vmem:[%s4 + $0x58] sm:$0xff]
        %v702 = vld [vmem:[%s4 + $0x60] sm:$0xff]
        %v703 = vld [vmem:[%s4 + $0x68] sm:$0xff]
        %v704 = vld [vmem:[%s4 + $0x70] sm:$0xff]
        %v705 = vld [vmem:[%s4 + $0x78] sm:$0xff]
        %706 = vrot.lane.b32.xlu0 %v658, 1
        %v707 = vpop.permute.xlu0 %706
        %708 = vrot.lane.b32.xlu0 %v659, 1
        %v709 = vpop.permute.xlu0 %708
        %710 = vrot.lane.b32.xlu0 %v660, 1
        %v711 = vpop.permute.xlu0 %710
        %712 = vrot.lane.b32.xlu0 %v661, 1
        %v713 = vpop.permute.xlu0 %712
        %714 = vrot.lane.b32.xlu0 %v662, 1
        %v715 = vpop.permute.xlu0 %714
        %716 = vrot.lane.b32.xlu0 %v663, 1
        %v717 = vpop.permute.xlu0 %716
        %718 = vrot.lane.b32.xlu0 %v664, 1
        %v719 = vpop.permute.xlu0 %718
        %720 = vrot.lane.b32.xlu0 %v665, 1
        %v721 = vpop.permute.xlu0 %720
        %722 = vrot.lane.b32.xlu0 %v666, 1
        %v723 = vpop.permute.xlu0 %722
        %724 = vrot.lane.b32.xlu0 %v667, 1
        %v725 = vpop.permute.xlu0 %724
        %726 = vrot.lane.b32.xlu0 %v668, 1
        %v727 = vpop.permute.xlu0 %726
        %728 = vrot.lane.b32.xlu0 %v669, 1
        %v729 = vpop.permute.xlu0 %728
        %730 = vrot.lane.b32.xlu0 %v670, 1
        %v731 = vpop.permute.xlu0 %730
        %732 = vrot.lane.b32.xlu0 %v671, 1
        %v733 = vpop.permute.xlu0 %732
        %734 = vrot.lane.b32.xlu0 %v672, 1
        %v735 = vpop.permute.xlu0 %734
        %736 = vrot.lane.b32.xlu0 %v673, 1
        %v737 = vpop.permute.xlu0 %736
        %738 = vrot.lane.b32.xlu0 %v674, 1
        %v739 = vpop.permute.xlu0 %738
        %740 = vrot.lane.b32.xlu0 %v675, 1
        %v741 = vpop.permute.xlu0 %740
        %742 = vrot.lane.b32.xlu0 %v676, 1
        %v743 = vpop.permute.xlu0 %742
        %744 = vrot.lane.b32.xlu0 %v677, 1
        %v745 = vpop.permute.xlu0 %744
        %746 = vrot.lane.b32.xlu0 %v678, 1
        %v747 = vpop.permute.xlu0 %746
        %748 = vrot.lane.b32.xlu0 %v679, 1
        %v749 = vpop.permute.xlu0 %748
        %750 = vrot.lane.b32.xlu0 %v680, 1
        %v751 = vpop.permute.xlu0 %750
        %752 = vrot.lane.b32.xlu0 %v681, 1
        %v753 = vpop.permute.xlu0 %752
        %754 = vrot.lane.b32.xlu0 %v682, 1
        %v755 = vpop.permute.xlu0 %754
        %756 = vrot.lane.b32.xlu0 %v683, 1
        %v757 = vpop.permute.xlu0 %756
        %758 = vrot.lane.b32.xlu0 %v684, 1
        %v759 = vpop.permute.xlu0 %758
        %760 = vrot.lane.b32.xlu0 %v685, 1
        %v761 = vpop.permute.xlu0 %760
        %762 = vrot.lane.b32.xlu0 %v686, 1
        %v763 = vpop.permute.xlu0 %762
        %764 = vrot.lane.b32.xlu0 %v687, 1
        %v765 = vpop.permute.xlu0 %764
        %766 = vrot.lane.b32.xlu0 %v688, 1
        %v767 = vpop.permute.xlu0 %766
        %768 = vrot.lane.b32.xlu0 %v689, 1
        %v769 = vpop.permute.xlu0 %768
        %v770 = vsel %vm355, %v707, %v739
        %v771 = vsel %vm355, %v709, %v741
        %v772 = vsel %vm355, %v711, %v743
        %v773 = vsel %vm355, %v713, %v745
        %v774 = vsel %vm355, %v715, %v747
        %v775 = vsel %vm355, %v717, %v749
        %v776 = vsel %vm355, %v719, %v751
        %v777 = vsel %vm355, %v721, %v753
        %v778 = vsel %vm355, %v723, %v755
        %v779 = vsel %vm355, %v725, %v757
        %v780 = vsel %vm355, %v727, %v759
        %v781 = vsel %vm355, %v729, %v761
        %v782 = vsel %vm355, %v731, %v763
        %v783 = vsel %vm355, %v733, %v765
        %v784 = vsel %vm355, %v735, %v767
        %v785 = vsel %vm355, %v737, %v769
        %v786 = vsel %vm355, %v739, %v707
        %v787 = vsel %vm355, %v741, %v709
        %v788 = vsel %vm355, %v743, %v711
        %v789 = vsel %vm355, %v745, %v713
        %v790 = vsel %vm355, %v747, %v715
        %v791 = vsel %vm355, %v749, %v717
        %v792 = vsel %vm355, %v751, %v719
        %v793 = vsel %vm355, %v753, %v721
        %v794 = vsel %vm355, %v755, %v723
        %v795 = vsel %vm355, %v757, %v725
        %v796 = vsel %vm355, %v759, %v727
        %v797 = vsel %vm355, %v761, %v729
        %v798 = vsel %vm355, %v763, %v731
        %v799 = vsel %vm355, %v765, %v733
        %v800 = vsel %vm355, %v767, %v735
        %v801 = vsel %vm355, %v769, %v737
        %v802 = vld [vmem:[%s1] sm:$0x3]
        %v804 = vperm.slane %v802, 0
        %v805 = vperm.slane %v802, 1
        %v808 = vmul.f32 %v786, %v804
        %v809 = vmul.f32 %v770, %v805
        %v810 = vmul.f32 %v787, %v804
        %v811 = vmul.f32 %v771, %v805
        %v812 = vmul.f32 %v788, %v804
        %v813 = vmul.f32 %v772, %v805
        %v814 = vmul.f32 %v789, %v804
        %v815 = vmul.f32 %v773, %v805
        %v816 = vmul.f32 %v790, %v804
        %v817 = vmul.f32 %v774, %v805
        %v818 = vmul.f32 %v791, %v804
        %v819 = vmul.f32 %v775, %v805
        %v820 = vmul.f32 %v792, %v804
        %v821 = vmul.f32 %v776, %v805
        %v822 = vmul.f32 %v793, %v804
        %v823 = vmul.f32 %v777, %v805
        %v824 = vmul.f32 %v794, %v804
        %v825 = vmul.f32 %v778, %v805
        %v826 = vmul.f32 %v795, %v804
        %v827 = vmul.f32 %v779, %v805
        %v828 = vmul.f32 %v796, %v804
        %v829 = vmul.f32 %v780, %v805
        %v830 = vmul.f32 %v797, %v804
        %v831 = vmul.f32 %v781, %v805
        %v832 = vmul.f32 %v798, %v804
        %v833 = vmul.f32 %v782, %v805
        %v834 = vmul.f32 %v799, %v804
        %v835 = vmul.f32 %v783, %v805
        %v836 = vmul.f32 %v800, %v804
        %v837 = vmul.f32 %v784, %v805
        %v838 = vmul.f32 %v801, %v804
        %v839 = vmul.f32 %v785, %v805
        %s840 = scalar_lea.vmem %s4, 128
        %v841 = vld [vmem:[%s840] sm:$0xff]
        %v842 = vld [vmem:[%s840 + $0x8] sm:$0xff]
        %v843 = vld [vmem:[%s840 + $0x10] sm:$0xff]
        %v844 = vld [vmem:[%s840 + $0x18] sm:$0xff]
        %v845 = vld [vmem:[%s840 + $0x20] sm:$0xff]
        %v846 = vld [vmem:[%s840 + $0x28] sm:$0xff]
        %v847 = vld [vmem:[%s840 + $0x30] sm:$0xff]
        %v848 = vld [vmem:[%s840 + $0x38] sm:$0xff]
        %v849 = vld [vmem:[%s840 + $0x40] sm:$0xff]
        %v850 = vld [vmem:[%s840 + $0x48] sm:$0xff]
        %v851 = vld [vmem:[%s840 + $0x50] sm:$0xff]
        %v852 = vld [vmem:[%s840 + $0x58] sm:$0xff]
        %v853 = vld [vmem:[%s840 + $0x60] sm:$0xff]
        %v854 = vld [vmem:[%s840 + $0x68] sm:$0xff]
        %v855 = vld [vmem:[%s840 + $0x70] sm:$0xff]
        %v856 = vld [vmem:[%s840 + $0x78] sm:$0xff]
        %857 = vmatpush.msra.mxu0 %v673
        %858 = vmatpush.msra.mxu0 %v672
        %859 = vmatpush.msra.mxu0 %v671
        %860 = vmatpush.msra.mxu0 %v670
        %861 = vmatpush.msra.mxu0 %v669
        %862 = vmatpush.msra.mxu0 %v668
        %863 = vmatpush.msra.mxu0 %v667
        %864 = vmatpush.msra.mxu0 %v666
        %865 = vmatpush.msra.mxu0 %v665
        %866 = vmatpush.msra.mxu0 %v664
        %867 = vmatpush.msra.mxu0 %v663
        %868 = vmatpush.msra.mxu0 %v662
        %869 = vmatpush.msra.mxu0 %v661
        %870 = vmatpush.msra.mxu0 %v660
        %871 = vmatpush.msra.mxu0 %v659
        %872 = vmatpush.msra.mxu0 %v658
        %873 = vmatmul.f32.gmra.mxu0 %v841
        %v874 = vpop.f32.mrf.mxu0
        %v875 = vadd.f32 0.0, %v874
        %876 = vmatmul.f32.gmra.mxu0 %v842
        %v877 = vpop.f32.mrf.mxu0
        %v878 = vadd.f32 0.0, %v877
        %879 = vmatmul.f32.gmra.mxu0 %v843
        %v880 = vpop.f32.mrf.mxu0
        %v881 = vadd.f32 0.0, %v880
        %882 = vmatmul.f32.gmra.mxu0 %v844
        %v883 = vpop.f32.mrf.mxu0
        %v884 = vadd.f32 0.0, %v883
        %885 = vmatmul.f32.gmra.mxu0 %v845
        %v886 = vpop.f32.mrf.mxu0
        %v887 = vadd.f32 0.0, %v886
        %888 = vmatmul.f32.gmra.mxu0 %v846
        %v889 = vpop.f32.mrf.mxu0
        %v890 = vadd.f32 0.0, %v889
        %891 = vmatmul.f32.gmra.mxu0 %v847
        %v892 = vpop.f32.mrf.mxu0
        %v893 = vadd.f32 0.0, %v892
        %894 = vmatmul.f32.gmra.mxu0 %v848
        %v895 = vpop.f32.mrf.mxu0
        %v896 = vadd.f32 0.0, %v895
        %897 = vmatmul.f32.gmra.mxu0 %v849
        %v898 = vpop.f32.mrf.mxu0
        %v899 = vadd.f32 0.0, %v898
        %900 = vmatmul.f32.gmra.mxu0 %v850
        %v901 = vpop.f32.mrf.mxu0
        %v902 = vadd.f32 0.0, %v901
        %903 = vmatmul.f32.gmra.mxu0 %v851
        %v904 = vpop.f32.mrf.mxu0
        %v905 = vadd.f32 0.0, %v904
        %906 = vmatmul.f32.gmra.mxu0 %v852
        %v907 = vpop.f32.mrf.mxu0
        %v908 = vadd.f32 0.0, %v907
        %909 = vmatmul.f32.gmra.mxu0 %v853
        %v910 = vpop.f32.mrf.mxu0
        %v911 = vadd.f32 0.0, %v910
        %912 = vmatmul.f32.gmra.mxu0 %v854
        %v913 = vpop.f32.mrf.mxu0
        %v914 = vadd.f32 0.0, %v913
        %915 = vmatmul.f32.gmra.mxu0 %v855
        %v916 = vpop.f32.mrf.mxu0
        %v917 = vadd.f32 0.0, %v916
        %918 = vmatmul.f32.gmra.mxu0 %v856
        %v919 = vpop.f32.mrf.mxu0
        %v920 = vadd.f32 0.0, %v919
        %921 = vdwg.mxu0
        %922 = vmatpush.msra.mxu0 %v689
        %923 = vmatpush.msra.mxu0 %v688
        %924 = vmatpush.msra.mxu0 %v687
        %925 = vmatpush.msra.mxu0 %v686
        %926 = vmatpush.msra.mxu0 %v685
        %927 = vmatpush.msra.mxu0 %v684
        %928 = vmatpush.msra.mxu0 %v683
        %929 = vmatpush.msra.mxu0 %v682
        %930 = vmatpush.msra.mxu0 %v681
        %931 = vmatpush.msra.mxu0 %v680
        %932 = vmatpush.msra.mxu0 %v679
        %933 = vmatpush.msra.mxu0 %v678
        %934 = vmatpush.msra.mxu0 %v677
        %935 = vmatpush.msra.mxu0 %v676
        %936 = vmatpush.msra.mxu0 %v675
        %937 = vmatpush.msra.mxu0 %v674
        %938 = vmatmul.f32.gmra.mxu0 %v841
        %v939 = vpop.f32.mrf.mxu0
        %v940 = vadd.f32 0.0, %v939
        %941 = vmatmul.f32.gmra.mxu0 %v842
        %v942 = vpop.f32.mrf.mxu0
        %v943 = vadd.f32 0.0, %v942
        %944 = vmatmul.f32.gmra.mxu0 %v843
        %v945 = vpop.f32.mrf.mxu0
        %v946 = vadd.f32 0.0, %v945
        %947 = vmatmul.f32.gmra.mxu0 %v844
        %v948 = vpop.f32.mrf.mxu0
        %v949 = vadd.f32 0.0, %v948
        %950 = vmatmul.f32.gmra.mxu0 %v845
        %v951 = vpop.f32.mrf.mxu0
        %v952 = vadd.f32 0.0, %v951
        %953 = vmatmul.f32.gmra.mxu0 %v846
        %v954 = vpop.f32.mrf.mxu0
        %v955 = vadd.f32 0.0, %v954
        %956 = vmatmul.f32.gmra.mxu0 %v847
        %v957 = vpop.f32.mrf.mxu0
        %v958 = vadd.f32 0.0, %v957
        %959 = vmatmul.f32.gmra.mxu0 %v848
        %v960 = vpop.f32.mrf.mxu0
        %v961 = vadd.f32 0.0, %v960
        %962 = vmatmul.f32.gmra.mxu0 %v849
        %v963 = vpop.f32.mrf.mxu0
        %v964 = vadd.f32 0.0, %v963
        %965 = vmatmul.f32.gmra.mxu0 %v850
        %v966 = vpop.f32.mrf.mxu0
        %v967 = vadd.f32 0.0, %v966
        %968 = vmatmul.f32.gmra.mxu0 %v851
        %v969 = vpop.f32.mrf.mxu0
        %v970 = vadd.f32 0.0, %v969
        %971 = vmatmul.f32.gmra.mxu0 %v852
        %v972 = vpop.f32.mrf.mxu0
        %v973 = vadd.f32 0.0, %v972
        %974 = vmatmul.f32.gmra.mxu0 %v853
        %v975 = vpop.f32.mrf.mxu0
        %v976 = vadd.f32 0.0, %v975
        %977 = vmatmul.f32.gmra.mxu0 %v854
        %v978 = vpop.f32.mrf.mxu0
        %v979 = vadd.f32 0.0, %v978
        %980 = vmatmul.f32.gmra.mxu0 %v855
        %v981 = vpop.f32.mrf.mxu0
        %v982 = vadd.f32 0.0, %v981
        %983 = vmatmul.f32.gmra.mxu0 %v856
        %v984 = vpop.f32.mrf.mxu0
        %v985 = vadd.f32 0.0, %v984
        %986 = vdwg.mxu0
        %987 = vmatpush.msra.mxu0 %v838
        %988 = vmatpush.msra.mxu0 %v836
        %989 = vmatpush.msra.mxu0 %v834
        %990 = vmatpush.msra.mxu0 %v832
        %991 = vmatpush.msra.mxu0 %v830
        %992 = vmatpush.msra.mxu0 %v828
        %993 = vmatpush.msra.mxu0 %v826
        %994 = vmatpush.msra.mxu0 %v824
        %995 = vmatpush.msra.mxu0 %v822
        %996 = vmatpush.msra.mxu0 %v820
        %997 = vmatpush.msra.mxu0 %v818
        %998 = vmatpush.msra.mxu0 %v816
        %999 = vmatpush.msra.mxu0 %v814
        %1000 = vmatpush.msra.mxu0 %v812
        %1001 = vmatpush.msra.mxu0 %v810
        %1002 = vmatpush.msra.mxu0 %v808
        %1003 = vmatmul.f32.gmra.mxu0 %v690
        %v1004 = vpop.f32.mrf.mxu0
        %v1005 = vadd.f32 %v875, %v1004
        %1006 = vmatmul.f32.gmra.mxu0 %v691
        %v1007 = vpop.f32.mrf.mxu0
        %v1008 = vadd.f32 %v878, %v1007
        %1009 = vmatmul.f32.gmra.mxu0 %v692
        %v1010 = vpop.f32.mrf.mxu0
        %v1011 = vadd.f32 %v881, %v1010
        %1012 = vmatmul.f32.gmra.mxu0 %v693
        %v1013 = vpop.f32.mrf.mxu0
        %v1014 = vadd.f32 %v884, %v1013
        %1015 = vmatmul.f32.gmra.mxu0 %v694
        %v1016 = vpop.f32.mrf.mxu0
        %v1017 = vadd.f32 %v887, %v1016
        %1018 = vmatmul.f32.gmra.mxu0 %v695
        %v1019 = vpop.f32.mrf.mxu0
        %v1020 = vadd.f32 %v890, %v1019
        %1021 = vmatmul.f32.gmra.mxu0 %v696
        %v1022 = vpop.f32.mrf.mxu0
        %v1023 = vadd.f32 %v893, %v1022
        %1024 = vmatmul.f32.gmra.mxu0 %v697
        %v1025 = vpop.f32.mrf.mxu0
        %v1026 = vadd.f32 %v896, %v1025
        %1027 = vmatmul.f32.gmra.mxu0 %v698
        %v1028 = vpop.f32.mrf.mxu0
        %v1029 = vadd.f32 %v899, %v1028
        %1030 = vmatmul.f32.gmra.mxu0 %v699
        %v1031 = vpop.f32.mrf.mxu0
        %v1032 = vadd.f32 %v902, %v1031
        %1033 = vmatmul.f32.gmra.mxu0 %v700
        %v1034 = vpop.f32.mrf.mxu0
        %v1035 = vadd.f32 %v905, %v1034
        %1036 = vmatmul.f32.gmra.mxu0 %v701
        %v1037 = vpop.f32.mrf.mxu0
        %v1038 = vadd.f32 %v908, %v1037
        %1039 = vmatmul.f32.gmra.mxu0 %v702
        %v1040 = vpop.f32.mrf.mxu0
        %v1041 = vadd.f32 %v911, %v1040
        %1042 = vmatmul.f32.gmra.mxu0 %v703
        %v1043 = vpop.f32.mrf.mxu0
        %v1044 = vadd.f32 %v914, %v1043
        %1045 = vmatmul.f32.gmra.mxu0 %v704
        %v1046 = vpop.f32.mrf.mxu0
        %v1047 = vadd.f32 %v917, %v1046
        %1048 = vmatmul.f32.gmra.mxu0 %v705
        %v1049 = vpop.f32.mrf.mxu0
        %v1050 = vadd.f32 %v920, %v1049
        %1051 = vdwg.mxu0
        %1052 = vmatpush.msra.mxu0 %v839
        %1053 = vmatpush.msra.mxu0 %v837
        %1054 = vmatpush.msra.mxu0 %v835
        %1055 = vmatpush.msra.mxu0 %v833
        %1056 = vmatpush.msra.mxu0 %v831
        %1057 = vmatpush.msra.mxu0 %v829
        %1058 = vmatpush.msra.mxu0 %v827
        %1059 = vmatpush.msra.mxu0 %v825
        %1060 = vmatpush.msra.mxu0 %v823
        %1061 = vmatpush.msra.mxu0 %v821
        %1062 = vmatpush.msra.mxu0 %v819
        %1063 = vmatpush.msra.mxu0 %v817
        %1064 = vmatpush.msra.mxu0 %v815
        %1065 = vmatpush.msra.mxu0 %v813
        %1066 = vmatpush.msra.mxu0 %v811
        %1067 = vmatpush.msra.mxu0 %v809
        %1068 = vmatmul.f32.gmra.mxu0 %v690
        %v1069 = vpop.f32.mrf.mxu0
        %v1070 = vadd.f32 %v940, %v1069
        %1071 = vmatmul.f32.gmra.mxu0 %v691
        %v1072 = vpop.f32.mrf.mxu0
        %v1073 = vadd.f32 %v943, %v1072
        %1074 = vmatmul.f32.gmra.mxu0 %v692
        %v1075 = vpop.f32.mrf.mxu0
        %v1076 = vadd.f32 %v946, %v1075
        %1077 = vmatmul.f32.gmra.mxu0 %v693
        %v1078 = vpop.f32.mrf.mxu0
        %v1079 = vadd.f32 %v949, %v1078
        %1080 = vmatmul.f32.gmra.mxu0 %v694
        %v1081 = vpop.f32.mrf.mxu0
        %v1082 = vadd.f32 %v952, %v1081
        %1083 = vmatmul.f32.gmra.mxu0 %v695
        %v1084 = vpop.f32.mrf.mxu0
        %v1085 = vadd.f32 %v955, %v1084
        %1086 = vmatmul.f32.gmra.mxu0 %v696
        %v1087 = vpop.f32.mrf.mxu0
        %v1088 = vadd.f32 %v958, %v1087
        %1089 = vmatmul.f32.gmra.mxu0 %v697
        %v1090 = vpop.f32.mrf.mxu0
        %v1091 = vadd.f32 %v961, %v1090
        %1092 = vmatmul.f32.gmra.mxu0 %v698
        %v1093 = vpop.f32.mrf.mxu0
        %v1094 = vadd.f32 %v964, %v1093
        %1095 = vmatmul.f32.gmra.mxu0 %v699
        %v1096 = vpop.f32.mrf.mxu0
        %v1097 = vadd.f32 %v967, %v1096
        %1098 = vmatmul.f32.gmra.mxu0 %v700
        %v1099 = vpop.f32.mrf.mxu0
        %v1100 = vadd.f32 %v970, %v1099
        %1101 = vmatmul.f32.gmra.mxu0 %v701
        %v1102 = vpop.f32.mrf.mxu0
        %v1103 = vadd.f32 %v973, %v1102
        %1104 = vmatmul.f32.gmra.mxu0 %v702
        %v1105 = vpop.f32.mrf.mxu0
        %v1106 = vadd.f32 %v976, %v1105
        %1107 = vmatmul.f32.gmra.mxu0 %v703
        %v1108 = vpop.f32.mrf.mxu0
        %v1109 = vadd.f32 %v979, %v1108
        %1110 = vmatmul.f32.gmra.mxu0 %v704
        %v1111 = vpop.f32.mrf.mxu0
        %v1112 = vadd.f32 %v982, %v1111
        %1113 = vmatmul.f32.gmra.mxu0 %v705
        %v1114 = vpop.f32.mrf.mxu0
        %v1115 = vadd.f32 %v985, %v1114
        %1116 = vdwg.mxu0
        %s1117 = scalar_lea.vmem %s4, 256
        %v1118 = vld [vmem:[%s1117] sm:$0xff]
        %v1119 = vld [vmem:[%s1117 + $0x8] sm:$0xff]
        %v1120 = vld [vmem:[%s1117 + $0x10] sm:$0xff]
        %v1121 = vld [vmem:[%s1117 + $0x18] sm:$0xff]
        %v1122 = vld [vmem:[%s1117 + $0x20] sm:$0xff]
        %v1123 = vld [vmem:[%s1117 + $0x28] sm:$0xff]
        %v1124 = vld [vmem:[%s1117 + $0x30] sm:$0xff]
        %v1125 = vld [vmem:[%s1117 + $0x38] sm:$0xff]
        %v1126 = vld [vmem:[%s1117 + $0x40] sm:$0xff]
        %v1127 = vld [vmem:[%s1117 + $0x48] sm:$0xff]
        %v1128 = vld [vmem:[%s1117 + $0x50] sm:$0xff]
        %v1129 = vld [vmem:[%s1117 + $0x58] sm:$0xff]
        %v1130 = vld [vmem:[%s1117 + $0x60] sm:$0xff]
        %v1131 = vld [vmem:[%s1117 + $0x68] sm:$0xff]
        %v1132 = vld [vmem:[%s1117 + $0x70] sm:$0xff]
        %v1133 = vld [vmem:[%s1117 + $0x78] sm:$0xff]
        %1134 = vrot.lane.b32.xlu0 %v658, 127
        %v1135 = vpop.permute.xlu0 %1134
        %1136 = vrot.lane.b32.xlu0 %v659, 127
        %v1137 = vpop.permute.xlu0 %1136
        %1138 = vrot.lane.b32.xlu0 %v660, 127
        %v1139 = vpop.permute.xlu0 %1138
        %1140 = vrot.lane.b32.xlu0 %v661, 127
        %v1141 = vpop.permute.xlu0 %1140
        %1142 = vrot.lane.b32.xlu0 %v662, 127
        %v1143 = vpop.permute.xlu0 %1142
        %1144 = vrot.lane.b32.xlu0 %v663, 127
        %v1145 = vpop.permute.xlu0 %1144
        %1146 = vrot.lane.b32.xlu0 %v664, 127
        %v1147 = vpop.permute.xlu0 %1146
        %1148 = vrot.lane.b32.xlu0 %v665, 127
        %v1149 = vpop.permute.xlu0 %1148
        %1150 = vrot.lane.b32.xlu0 %v666, 127
        %v1151 = vpop.permute.xlu0 %1150
        %1152 = vrot.lane.b32.xlu0 %v667, 127
        %v1153 = vpop.permute.xlu0 %1152
        %1154 = vrot.lane.b32.xlu0 %v668, 127
        %v1155 = vpop.permute.xlu0 %1154
        %1156 = vrot.lane.b32.xlu0 %v669, 127
        %v1157 = vpop.permute.xlu0 %1156
        %1158 = vrot.lane.b32.xlu0 %v670, 127
        %v1159 = vpop.permute.xlu0 %1158
        %1160 = vrot.lane.b32.xlu0 %v671, 127
        %v1161 = vpop.permute.xlu0 %1160
        %1162 = vrot.lane.b32.xlu0 %v672, 127
        %v1163 = vpop.permute.xlu0 %1162
        %1164 = vrot.lane.b32.xlu0 %v673, 127
        %v1165 = vpop.permute.xlu0 %1164
        %1166 = vrot.lane.b32.xlu0 %v674, 127
        %v1167 = vpop.permute.xlu0 %1166
        %1168 = vrot.lane.b32.xlu0 %v675, 127
        %v1169 = vpop.permute.xlu0 %1168
        %1170 = vrot.lane.b32.xlu0 %v676, 127
        %v1171 = vpop.permute.xlu0 %1170
        %1172 = vrot.lane.b32.xlu0 %v677, 127
        %v1173 = vpop.permute.xlu0 %1172
        %1174 = vrot.lane.b32.xlu0 %v678, 127
        %v1175 = vpop.permute.xlu0 %1174
        %1176 = vrot.lane.b32.xlu0 %v679, 127
        %v1177 = vpop.permute.xlu0 %1176
        %1178 = vrot.lane.b32.xlu0 %v680, 127
        %v1179 = vpop.permute.xlu0 %1178
        %1180 = vrot.lane.b32.xlu0 %v681, 127
        %v1181 = vpop.permute.xlu0 %1180
        %1182 = vrot.lane.b32.xlu0 %v682, 127
        %v1183 = vpop.permute.xlu0 %1182
        %1184 = vrot.lane.b32.xlu0 %v683, 127
        %v1185 = vpop.permute.xlu0 %1184
        %1186 = vrot.lane.b32.xlu0 %v684, 127
        %v1187 = vpop.permute.xlu0 %1186
        %1188 = vrot.lane.b32.xlu0 %v685, 127
        %v1189 = vpop.permute.xlu0 %1188
        %1190 = vrot.lane.b32.xlu0 %v686, 127
        %v1191 = vpop.permute.xlu0 %1190
        %1192 = vrot.lane.b32.xlu0 %v687, 127
        %v1193 = vpop.permute.xlu0 %1192
        %1194 = vrot.lane.b32.xlu0 %v688, 127
        %v1195 = vpop.permute.xlu0 %1194
        %1196 = vrot.lane.b32.xlu0 %v689, 127
        %v1197 = vpop.permute.xlu0 %1196
        %v1198 = vsel %vm370, %v1135, %v1167
        %v1199 = vsel %vm370, %v1137, %v1169
        %v1200 = vsel %vm370, %v1139, %v1171
        %v1201 = vsel %vm370, %v1141, %v1173
        %v1202 = vsel %vm370, %v1143, %v1175
        %v1203 = vsel %vm370, %v1145, %v1177
        %v1204 = vsel %vm370, %v1147, %v1179
        %v1205 = vsel %vm370, %v1149, %v1181
        %v1206 = vsel %vm370, %v1151, %v1183
        %v1207 = vsel %vm370, %v1153, %v1185
        %v1208 = vsel %vm370, %v1155, %v1187
        %v1209 = vsel %vm370, %v1157, %v1189
        %v1210 = vsel %vm370, %v1159, %v1191
        %v1211 = vsel %vm370, %v1161, %v1193
        %v1212 = vsel %vm370, %v1163, %v1195
        %v1213 = vsel %vm370, %v1165, %v1197
        %v1214 = vsel %vm370, %v1167, %v1135
        %v1215 = vsel %vm370, %v1169, %v1137
        %v1216 = vsel %vm370, %v1171, %v1139
        %v1217 = vsel %vm370, %v1173, %v1141
        %v1218 = vsel %vm370, %v1175, %v1143
        %v1219 = vsel %vm370, %v1177, %v1145
        %v1220 = vsel %vm370, %v1179, %v1147
        %v1221 = vsel %vm370, %v1181, %v1149
        %v1222 = vsel %vm370, %v1183, %v1151
        %v1223 = vsel %vm370, %v1185, %v1153
        %v1224 = vsel %vm370, %v1187, %v1155
        %v1225 = vsel %vm370, %v1189, %v1157
        %v1226 = vsel %vm370, %v1191, %v1159
        %v1227 = vsel %vm370, %v1193, %v1161
        %v1228 = vsel %vm370, %v1195, %v1163
        %v1229 = vsel %vm370, %v1197, %v1165
        %v1230 = vld [vmem:[%s373] sm:$0x3]
        %v1232 = vperm.slane %v1230, 0
        %v1233 = vperm.slane %v1230, 1
        %v1236 = vmul.f32 %v1198, %v1232
        %v1237 = vmul.f32 %v1214, %v1233
        %v1238 = vmul.f32 %v1199, %v1232
        %v1239 = vmul.f32 %v1215, %v1233
        %v1240 = vmul.f32 %v1200, %v1232
        %v1241 = vmul.f32 %v1216, %v1233
        %v1242 = vmul.f32 %v1201, %v1232
        %v1243 = vmul.f32 %v1217, %v1233
        %v1244 = vmul.f32 %v1202, %v1232
        %v1245 = vmul.f32 %v1218, %v1233
        %v1246 = vmul.f32 %v1203, %v1232
        %v1247 = vmul.f32 %v1219, %v1233
        %v1248 = vmul.f32 %v1204, %v1232
        %v1249 = vmul.f32 %v1220, %v1233
        %v1250 = vmul.f32 %v1205, %v1232
        %v1251 = vmul.f32 %v1221, %v1233
        %v1252 = vmul.f32 %v1206, %v1232
        %v1253 = vmul.f32 %v1222, %v1233
        %v1254 = vmul.f32 %v1207, %v1232
        %v1255 = vmul.f32 %v1223, %v1233
        %v1256 = vmul.f32 %v1208, %v1232
        %v1257 = vmul.f32 %v1224, %v1233
        %v1258 = vmul.f32 %v1209, %v1232
        %v1259 = vmul.f32 %v1225, %v1233
        %v1260 = vmul.f32 %v1210, %v1232
        %v1261 = vmul.f32 %v1226, %v1233
        %v1262 = vmul.f32 %v1211, %v1232
        %v1263 = vmul.f32 %v1227, %v1233
        %v1264 = vmul.f32 %v1212, %v1232
        %v1265 = vmul.f32 %v1228, %v1233
        %v1266 = vmul.f32 %v1213, %v1232
        %v1267 = vmul.f32 %v1229, %v1233
        %1268 = vmatpush.msra.mxu0 %v1266
        %1269 = vmatpush.msra.mxu0 %v1264
        %1270 = vmatpush.msra.mxu0 %v1262
        %1271 = vmatpush.msra.mxu0 %v1260
        %1272 = vmatpush.msra.mxu0 %v1258
        %1273 = vmatpush.msra.mxu0 %v1256
        %1274 = vmatpush.msra.mxu0 %v1254
        %1275 = vmatpush.msra.mxu0 %v1252
        %1276 = vmatpush.msra.mxu0 %v1250
        %1277 = vmatpush.msra.mxu0 %v1248
        %1278 = vmatpush.msra.mxu0 %v1246
        %1279 = vmatpush.msra.mxu0 %v1244
        %1280 = vmatpush.msra.mxu0 %v1242
        %1281 = vmatpush.msra.mxu0 %v1240
        %1282 = vmatpush.msra.mxu0 %v1238
        %1283 = vmatpush.msra.mxu0 %v1236
        %1284 = vmatmul.f32.gmra.mxu0 %v1118
        %v1285 = vpop.f32.mrf.mxu0
        %v1286 = vadd.f32 0.0, %v1285
        %1287 = vmatmul.f32.gmra.mxu0 %v1119
        %v1288 = vpop.f32.mrf.mxu0
        %v1289 = vadd.f32 0.0, %v1288
        %1290 = vmatmul.f32.gmra.mxu0 %v1120
        %v1291 = vpop.f32.mrf.mxu0
        %v1292 = vadd.f32 0.0, %v1291
        %1293 = vmatmul.f32.gmra.mxu0 %v1121
        %v1294 = vpop.f32.mrf.mxu0
        %v1295 = vadd.f32 0.0, %v1294
        %1296 = vmatmul.f32.gmra.mxu0 %v1122
        %v1297 = vpop.f32.mrf.mxu0
        %v1298 = vadd.f32 0.0, %v1297
        %1299 = vmatmul.f32.gmra.mxu0 %v1123
        %v1300 = vpop.f32.mrf.mxu0
        %v1301 = vadd.f32 0.0, %v1300
        %1302 = vmatmul.f32.gmra.mxu0 %v1124
        %v1303 = vpop.f32.mrf.mxu0
        %v1304 = vadd.f32 0.0, %v1303
        %1305 = vmatmul.f32.gmra.mxu0 %v1125
        %v1306 = vpop.f32.mrf.mxu0
        %v1307 = vadd.f32 0.0, %v1306
        %1308 = vmatmul.f32.gmra.mxu0 %v1126
        %v1309 = vpop.f32.mrf.mxu0
        %v1310 = vadd.f32 0.0, %v1309
        %1311 = vmatmul.f32.gmra.mxu0 %v1127
        %v1312 = vpop.f32.mrf.mxu0
        %v1313 = vadd.f32 0.0, %v1312
        %1314 = vmatmul.f32.gmra.mxu0 %v1128
        %v1315 = vpop.f32.mrf.mxu0
        %v1316 = vadd.f32 0.0, %v1315
        %1317 = vmatmul.f32.gmra.mxu0 %v1129
        %v1318 = vpop.f32.mrf.mxu0
        %v1319 = vadd.f32 0.0, %v1318
        %1320 = vmatmul.f32.gmra.mxu0 %v1130
        %v1321 = vpop.f32.mrf.mxu0
        %v1322 = vadd.f32 0.0, %v1321
        %1323 = vmatmul.f32.gmra.mxu0 %v1131
        %v1324 = vpop.f32.mrf.mxu0
        %v1325 = vadd.f32 0.0, %v1324
        %1326 = vmatmul.f32.gmra.mxu0 %v1132
        %v1327 = vpop.f32.mrf.mxu0
        %v1328 = vadd.f32 0.0, %v1327
        %1329 = vmatmul.f32.gmra.mxu0 %v1133
        %v1330 = vpop.f32.mrf.mxu0
        %v1331 = vadd.f32 0.0, %v1330
        %1332 = vdwg.mxu0
        %1333 = vmatpush.msra.mxu0 %v1267
        %1334 = vmatpush.msra.mxu0 %v1265
        %1335 = vmatpush.msra.mxu0 %v1263
        %1336 = vmatpush.msra.mxu0 %v1261
        %1337 = vmatpush.msra.mxu0 %v1259
        %1338 = vmatpush.msra.mxu0 %v1257
        %1339 = vmatpush.msra.mxu0 %v1255
        %1340 = vmatpush.msra.mxu0 %v1253
        %1341 = vmatpush.msra.mxu0 %v1251
        %1342 = vmatpush.msra.mxu0 %v1249
        %1343 = vmatpush.msra.mxu0 %v1247
        %1344 = vmatpush.msra.mxu0 %v1245
        %1345 = vmatpush.msra.mxu0 %v1243
        %1346 = vmatpush.msra.mxu0 %v1241
        %1347 = vmatpush.msra.mxu0 %v1239
        %1348 = vmatpush.msra.mxu0 %v1237
        %1349 = vmatmul.f32.gmra.mxu0 %v1118
        %v1350 = vpop.f32.mrf.mxu0
        %v1351 = vadd.f32 0.0, %v1350
        %1352 = vmatmul.f32.gmra.mxu0 %v1119
        %v1353 = vpop.f32.mrf.mxu0
        %v1354 = vadd.f32 0.0, %v1353
        %1355 = vmatmul.f32.gmra.mxu0 %v1120
        %v1356 = vpop.f32.mrf.mxu0
        %v1357 = vadd.f32 0.0, %v1356
        %1358 = vmatmul.f32.gmra.mxu0 %v1121
        %v1359 = vpop.f32.mrf.mxu0
        %v1360 = vadd.f32 0.0, %v1359
        %1361 = vmatmul.f32.gmra.mxu0 %v1122
        %v1362 = vpop.f32.mrf.mxu0
        %v1363 = vadd.f32 0.0, %v1362
        %1364 = vmatmul.f32.gmra.mxu0 %v1123
        %v1365 = vpop.f32.mrf.mxu0
        %v1366 = vadd.f32 0.0, %v1365
        %1367 = vmatmul.f32.gmra.mxu0 %v1124
        %v1368 = vpop.f32.mrf.mxu0
        %v1369 = vadd.f32 0.0, %v1368
        %1370 = vmatmul.f32.gmra.mxu0 %v1125
        %v1371 = vpop.f32.mrf.mxu0
        %v1372 = vadd.f32 0.0, %v1371
        %1373 = vmatmul.f32.gmra.mxu0 %v1126
        %v1374 = vpop.f32.mrf.mxu0
        %v1375 = vadd.f32 0.0, %v1374
        %1376 = vmatmul.f32.gmra.mxu0 %v1127
        %v1377 = vpop.f32.mrf.mxu0
        %v1378 = vadd.f32 0.0, %v1377
        %1379 = vmatmul.f32.gmra.mxu0 %v1128
        %v1380 = vpop.f32.mrf.mxu0
        %v1381 = vadd.f32 0.0, %v1380
        %1382 = vmatmul.f32.gmra.mxu0 %v1129
        %v1383 = vpop.f32.mrf.mxu0
        %v1384 = vadd.f32 0.0, %v1383
        %1385 = vmatmul.f32.gmra.mxu0 %v1130
        %v1386 = vpop.f32.mrf.mxu0
        %v1387 = vadd.f32 0.0, %v1386
        %1388 = vmatmul.f32.gmra.mxu0 %v1131
        %v1389 = vpop.f32.mrf.mxu0
        %v1390 = vadd.f32 0.0, %v1389
        %1391 = vmatmul.f32.gmra.mxu0 %v1132
        %v1392 = vpop.f32.mrf.mxu0
        %v1393 = vadd.f32 0.0, %v1392
        %1394 = vmatmul.f32.gmra.mxu0 %v1133
        %v1395 = vpop.f32.mrf.mxu0
        %v1396 = vadd.f32 0.0, %v1395
        %1397 = vdwg.mxu0
        %v1398 = vadd.f32 %v1005, %v1286
        %v1399 = vadd.f32 %v1070, %v1351
        %v1400 = vadd.f32 %v1008, %v1289
        %v1401 = vadd.f32 %v1073, %v1354
        %v1402 = vadd.f32 %v1011, %v1292
        %v1403 = vadd.f32 %v1076, %v1357
        %v1404 = vadd.f32 %v1014, %v1295
        %v1405 = vadd.f32 %v1079, %v1360
        %v1406 = vadd.f32 %v1017, %v1298
        %v1407 = vadd.f32 %v1082, %v1363
        %v1408 = vadd.f32 %v1020, %v1301
        %v1409 = vadd.f32 %v1085, %v1366
        %v1410 = vadd.f32 %v1023, %v1304
        %v1411 = vadd.f32 %v1088, %v1369
        %v1412 = vadd.f32 %v1026, %v1307
        %v1413 = vadd.f32 %v1091, %v1372
        %v1414 = vadd.f32 %v1029, %v1310
        %v1415 = vadd.f32 %v1094, %v1375
        %v1416 = vadd.f32 %v1032, %v1313
        %v1417 = vadd.f32 %v1097, %v1378
        %v1418 = vadd.f32 %v1035, %v1316
        %v1419 = vadd.f32 %v1100, %v1381
        %v1420 = vadd.f32 %v1038, %v1319
        %v1421 = vadd.f32 %v1103, %v1384
        %v1422 = vadd.f32 %v1041, %v1322
        %v1423 = vadd.f32 %v1106, %v1387
        %v1424 = vadd.f32 %v1044, %v1325
        %v1425 = vadd.f32 %v1109, %v1390
        %v1426 = vadd.f32 %v1047, %v1328
        %v1427 = vadd.f32 %v1112, %v1393
        %v1428 = vadd.f32 %v1050, %v1331
        %v1429 = vadd.f32 %v1115, %v1396
        %s1430 = scalar_lea.vmem %s4, 384
        %v1431 = vld [vmem:[%s1430] sm:$0xff]
        %v1432 = vld [vmem:[%s1430 + $0x8] sm:$0xff]
        %v1433 = vld [vmem:[%s1430 + $0x10] sm:$0xff]
        %v1434 = vld [vmem:[%s1430 + $0x18] sm:$0xff]
        %v1435 = vld [vmem:[%s1430 + $0x20] sm:$0xff]
        %v1436 = vld [vmem:[%s1430 + $0x28] sm:$0xff]
        %v1437 = vld [vmem:[%s1430 + $0x30] sm:$0xff]
        %v1438 = vld [vmem:[%s1430 + $0x38] sm:$0xff]
        %v1439 = vld [vmem:[%s1430 + $0x40] sm:$0xff]
        %v1440 = vld [vmem:[%s1430 + $0x48] sm:$0xff]
        %v1441 = vld [vmem:[%s1430 + $0x50] sm:$0xff]
        %v1442 = vld [vmem:[%s1430 + $0x58] sm:$0xff]
        %v1443 = vld [vmem:[%s1430 + $0x60] sm:$0xff]
        %v1444 = vld [vmem:[%s1430 + $0x68] sm:$0xff]
        %v1445 = vld [vmem:[%s1430 + $0x70] sm:$0xff]
        %v1446 = vld [vmem:[%s1430 + $0x78] sm:$0xff]
        %1447 = vrot.lane.b32.xlu0 %v658, 126
        %v1448 = vpop.permute.xlu0 %1447
        %1449 = vrot.lane.b32.xlu0 %v659, 126
        %v1450 = vpop.permute.xlu0 %1449
        %1451 = vrot.lane.b32.xlu0 %v660, 126
        %v1452 = vpop.permute.xlu0 %1451
        %1453 = vrot.lane.b32.xlu0 %v661, 126
        %v1454 = vpop.permute.xlu0 %1453
        %1455 = vrot.lane.b32.xlu0 %v662, 126
        %v1456 = vpop.permute.xlu0 %1455
        %1457 = vrot.lane.b32.xlu0 %v663, 126
        %v1458 = vpop.permute.xlu0 %1457
        %1459 = vrot.lane.b32.xlu0 %v664, 126
        %v1460 = vpop.permute.xlu0 %1459
        %1461 = vrot.lane.b32.xlu0 %v665, 126
        %v1462 = vpop.permute.xlu0 %1461
        %1463 = vrot.lane.b32.xlu0 %v666, 126
        %v1464 = vpop.permute.xlu0 %1463
        %1465 = vrot.lane.b32.xlu0 %v667, 126
        %v1466 = vpop.permute.xlu0 %1465
        %1467 = vrot.lane.b32.xlu0 %v668, 126
        %v1468 = vpop.permute.xlu0 %1467
        %1469 = vrot.lane.b32.xlu0 %v669, 126
        %v1470 = vpop.permute.xlu0 %1469
        %1471 = vrot.lane.b32.xlu0 %v670, 126
        %v1472 = vpop.permute.xlu0 %1471
        %1473 = vrot.lane.b32.xlu0 %v671, 126
        %v1474 = vpop.permute.xlu0 %1473
        %1475 = vrot.lane.b32.xlu0 %v672, 126
        %v1476 = vpop.permute.xlu0 %1475
        %1477 = vrot.lane.b32.xlu0 %v673, 126
        %v1478 = vpop.permute.xlu0 %1477
        %1479 = vrot.lane.b32.xlu0 %v674, 126
        %v1480 = vpop.permute.xlu0 %1479
        %1481 = vrot.lane.b32.xlu0 %v675, 126
        %v1482 = vpop.permute.xlu0 %1481
        %1483 = vrot.lane.b32.xlu0 %v676, 126
        %v1484 = vpop.permute.xlu0 %1483
        %1485 = vrot.lane.b32.xlu0 %v677, 126
        %v1486 = vpop.permute.xlu0 %1485
        %1487 = vrot.lane.b32.xlu0 %v678, 126
        %v1488 = vpop.permute.xlu0 %1487
        %1489 = vrot.lane.b32.xlu0 %v679, 126
        %v1490 = vpop.permute.xlu0 %1489
        %1491 = vrot.lane.b32.xlu0 %v680, 126
        %v1492 = vpop.permute.xlu0 %1491
        %1493 = vrot.lane.b32.xlu0 %v681, 126
        %v1494 = vpop.permute.xlu0 %1493
        %1495 = vrot.lane.b32.xlu0 %v682, 126
        %v1496 = vpop.permute.xlu0 %1495
        %1497 = vrot.lane.b32.xlu0 %v683, 126
        %v1498 = vpop.permute.xlu0 %1497
        %1499 = vrot.lane.b32.xlu0 %v684, 126
        %v1500 = vpop.permute.xlu0 %1499
        %1501 = vrot.lane.b32.xlu0 %v685, 126
        %v1502 = vpop.permute.xlu0 %1501
        %1503 = vrot.lane.b32.xlu0 %v686, 126
        %v1504 = vpop.permute.xlu0 %1503
        %1505 = vrot.lane.b32.xlu0 %v687, 126
        %v1506 = vpop.permute.xlu0 %1505
        %1507 = vrot.lane.b32.xlu0 %v688, 126
        %v1508 = vpop.permute.xlu0 %1507
        %1509 = vrot.lane.b32.xlu0 %v689, 126
        %v1510 = vpop.permute.xlu0 %1509
        %v1511 = vsel %vm386, %v1448, %v1480
        %v1512 = vsel %vm386, %v1450, %v1482
        %v1513 = vsel %vm386, %v1452, %v1484
        %v1514 = vsel %vm386, %v1454, %v1486
        %v1515 = vsel %vm386, %v1456, %v1488
        %v1516 = vsel %vm386, %v1458, %v1490
        %v1517 = vsel %vm386, %v1460, %v1492
        %v1518 = vsel %vm386, %v1462, %v1494
        %v1519 = vsel %vm386, %v1464, %v1496
        %v1520 = vsel %vm386, %v1466, %v1498
        %v1521 = vsel %vm386, %v1468, %v1500
        %v1522 = vsel %vm386, %v1470, %v1502
        %v1523 = vsel %vm386, %v1472, %v1504
        %v1524 = vsel %vm386, %v1474, %v1506
        %v1525 = vsel %vm386, %v1476, %v1508
        %v1526 = vsel %vm386, %v1478, %v1510
        %v1527 = vsel %vm386, %v1480, %v1448
        %v1528 = vsel %vm386, %v1482, %v1450
        %v1529 = vsel %vm386, %v1484, %v1452
        %v1530 = vsel %vm386, %v1486, %v1454
        %v1531 = vsel %vm386, %v1488, %v1456
        %v1532 = vsel %vm386, %v1490, %v1458
        %v1533 = vsel %vm386, %v1492, %v1460
        %v1534 = vsel %vm386, %v1494, %v1462
        %v1535 = vsel %vm386, %v1496, %v1464
        %v1536 = vsel %vm386, %v1498, %v1466
        %v1537 = vsel %vm386, %v1500, %v1468
        %v1538 = vsel %vm386, %v1502, %v1470
        %v1539 = vsel %vm386, %v1504, %v1472
        %v1540 = vsel %vm386, %v1506, %v1474
        %v1541 = vsel %vm386, %v1508, %v1476
        %v1542 = vsel %vm386, %v1510, %v1478
        %v1543 = vld [vmem:[%s389] sm:$0x3]
        %v1545 = vperm.slane %v1543, 0
        %v1546 = vperm.slane %v1543, 1
        %v1549 = vmul.f32 %v1511, %v1545
        %v1550 = vmul.f32 %v1527, %v1546
        %v1551 = vmul.f32 %v1512, %v1545
        %v1552 = vmul.f32 %v1528, %v1546
        %v1553 = vmul.f32 %v1513, %v1545
        %v1554 = vmul.f32 %v1529, %v1546
        %v1555 = vmul.f32 %v1514, %v1545
        %v1556 = vmul.f32 %v1530, %v1546
        %v1557 = vmul.f32 %v1515, %v1545
        %v1558 = vmul.f32 %v1531, %v1546
        %v1559 = vmul.f32 %v1516, %v1545
        %v1560 = vmul.f32 %v1532, %v1546
        %v1561 = vmul.f32 %v1517, %v1545
        %v1562 = vmul.f32 %v1533, %v1546
        %v1563 = vmul.f32 %v1518, %v1545
        %v1564 = vmul.f32 %v1534, %v1546
        %v1565 = vmul.f32 %v1519, %v1545
        %v1566 = vmul.f32 %v1535, %v1546
        %v1567 = vmul.f32 %v1520, %v1545
        %v1568 = vmul.f32 %v1536, %v1546
        %v1569 = vmul.f32 %v1521, %v1545
        %v1570 = vmul.f32 %v1537, %v1546
        %v1571 = vmul.f32 %v1522, %v1545
        %v1572 = vmul.f32 %v1538, %v1546
        %v1573 = vmul.f32 %v1523, %v1545
        %v1574 = vmul.f32 %v1539, %v1546
        %v1575 = vmul.f32 %v1524, %v1545
        %v1576 = vmul.f32 %v1540, %v1546
        %v1577 = vmul.f32 %v1525, %v1545
        %v1578 = vmul.f32 %v1541, %v1546
        %v1579 = vmul.f32 %v1526, %v1545
        %v1580 = vmul.f32 %v1542, %v1546
        %1581 = vmatpush.msra.mxu0 %v1579
        %1582 = vmatpush.msra.mxu0 %v1577
        %1583 = vmatpush.msra.mxu0 %v1575
        %1584 = vmatpush.msra.mxu0 %v1573
        %1585 = vmatpush.msra.mxu0 %v1571
        %1586 = vmatpush.msra.mxu0 %v1569
        %1587 = vmatpush.msra.mxu0 %v1567
        %1588 = vmatpush.msra.mxu0 %v1565
        %1589 = vmatpush.msra.mxu0 %v1563
        %1590 = vmatpush.msra.mxu0 %v1561
        %1591 = vmatpush.msra.mxu0 %v1559
        %1592 = vmatpush.msra.mxu0 %v1557
        %1593 = vmatpush.msra.mxu0 %v1555
        %1594 = vmatpush.msra.mxu0 %v1553
        %1595 = vmatpush.msra.mxu0 %v1551
        %1596 = vmatpush.msra.mxu0 %v1549
        %1597 = vmatmul.f32.gmra.mxu0 %v1431
        %v1598 = vpop.f32.mrf.mxu0
        %v1599 = vadd.f32 0.0, %v1598
        %1600 = vmatmul.f32.gmra.mxu0 %v1432
        %v1601 = vpop.f32.mrf.mxu0
        %v1602 = vadd.f32 0.0, %v1601
        %1603 = vmatmul.f32.gmra.mxu0 %v1433
        %v1604 = vpop.f32.mrf.mxu0
        %v1605 = vadd.f32 0.0, %v1604
        %1606 = vmatmul.f32.gmra.mxu0 %v1434
        %v1607 = vpop.f32.mrf.mxu0
        %v1608 = vadd.f32 0.0, %v1607
        %1609 = vmatmul.f32.gmra.mxu0 %v1435
        %v1610 = vpop.f32.mrf.mxu0
        %v1611 = vadd.f32 0.0, %v1610
        %1612 = vmatmul.f32.gmra.mxu0 %v1436
        %v1613 = vpop.f32.mrf.mxu0
        %v1614 = vadd.f32 0.0, %v1613
        %1615 = vmatmul.f32.gmra.mxu0 %v1437
        %v1616 = vpop.f32.mrf.mxu0
        %v1617 = vadd.f32 0.0, %v1616
        %1618 = vmatmul.f32.gmra.mxu0 %v1438
        %v1619 = vpop.f32.mrf.mxu0
        %v1620 = vadd.f32 0.0, %v1619
        %1621 = vmatmul.f32.gmra.mxu0 %v1439
        %v1622 = vpop.f32.mrf.mxu0
        %v1623 = vadd.f32 0.0, %v1622
        %1624 = vmatmul.f32.gmra.mxu0 %v1440
        %v1625 = vpop.f32.mrf.mxu0
        %v1626 = vadd.f32 0.0, %v1625
        %1627 = vmatmul.f32.gmra.mxu0 %v1441
        %v1628 = vpop.f32.mrf.mxu0
        %v1629 = vadd.f32 0.0, %v1628
        %1630 = vmatmul.f32.gmra.mxu0 %v1442
        %v1631 = vpop.f32.mrf.mxu0
        %v1632 = vadd.f32 0.0, %v1631
        %1633 = vmatmul.f32.gmra.mxu0 %v1443
        %v1634 = vpop.f32.mrf.mxu0
        %v1635 = vadd.f32 0.0, %v1634
        %1636 = vmatmul.f32.gmra.mxu0 %v1444
        %v1637 = vpop.f32.mrf.mxu0
        %v1638 = vadd.f32 0.0, %v1637
        %1639 = vmatmul.f32.gmra.mxu0 %v1445
        %v1640 = vpop.f32.mrf.mxu0
        %v1641 = vadd.f32 0.0, %v1640
        %1642 = vmatmul.f32.gmra.mxu0 %v1446
        %v1643 = vpop.f32.mrf.mxu0
        %v1644 = vadd.f32 0.0, %v1643
        %1645 = vdwg.mxu0
        %1646 = vmatpush.msra.mxu0 %v1580
        %1647 = vmatpush.msra.mxu0 %v1578
        %1648 = vmatpush.msra.mxu0 %v1576
        %1649 = vmatpush.msra.mxu0 %v1574
        %1650 = vmatpush.msra.mxu0 %v1572
        %1651 = vmatpush.msra.mxu0 %v1570
        %1652 = vmatpush.msra.mxu0 %v1568
        %1653 = vmatpush.msra.mxu0 %v1566
        %1654 = vmatpush.msra.mxu0 %v1564
        %1655 = vmatpush.msra.mxu0 %v1562
        %1656 = vmatpush.msra.mxu0 %v1560
        %1657 = vmatpush.msra.mxu0 %v1558
        %1658 = vmatpush.msra.mxu0 %v1556
        %1659 = vmatpush.msra.mxu0 %v1554
        %1660 = vmatpush.msra.mxu0 %v1552
        %1661 = vmatpush.msra.mxu0 %v1550
        %1662 = vmatmul.f32.gmra.mxu0 %v1431
        %v1663 = vpop.f32.mrf.mxu0
        %v1664 = vadd.f32 0.0, %v1663
        %1665 = vmatmul.f32.gmra.mxu0 %v1432
        %v1666 = vpop.f32.mrf.mxu0
        %v1667 = vadd.f32 0.0, %v1666
        %1668 = vmatmul.f32.gmra.mxu0 %v1433
        %v1669 = vpop.f32.mrf.mxu0
        %v1670 = vadd.f32 0.0, %v1669
        %1671 = vmatmul.f32.gmra.mxu0 %v1434
        %v1672 = vpop.f32.mrf.mxu0
        %v1673 = vadd.f32 0.0, %v1672
        %1674 = vmatmul.f32.gmra.mxu0 %v1435
        %v1675 = vpop.f32.mrf.mxu0
        %v1676 = vadd.f32 0.0, %v1675
        %1677 = vmatmul.f32.gmra.mxu0 %v1436
        %v1678 = vpop.f32.mrf.mxu0
        %v1679 = vadd.f32 0.0, %v1678
        %1680 = vmatmul.f32.gmra.mxu0 %v1437
        %v1681 = vpop.f32.mrf.mxu0
        %v1682 = vadd.f32 0.0, %v1681
        %1683 = vmatmul.f32.gmra.mxu0 %v1438
        %v1684 = vpop.f32.mrf.mxu0
        %v1685 = vadd.f32 0.0, %v1684
        %1686 = vmatmul.f32.gmra.mxu0 %v1439
        %v1687 = vpop.f32.mrf.mxu0
        %v1688 = vadd.f32 0.0, %v1687
        %1689 = vmatmul.f32.gmra.mxu0 %v1440
        %v1690 = vpop.f32.mrf.mxu0
        %v1691 = vadd.f32 0.0, %v1690
        %1692 = vmatmul.f32.gmra.mxu0 %v1441
        %v1693 = vpop.f32.mrf.mxu0
        %v1694 = vadd.f32 0.0, %v1693
        %1695 = vmatmul.f32.gmra.mxu0 %v1442
        %v1696 = vpop.f32.mrf.mxu0
        %v1697 = vadd.f32 0.0, %v1696
        %1698 = vmatmul.f32.gmra.mxu0 %v1443
        %v1699 = vpop.f32.mrf.mxu0
        %v1700 = vadd.f32 0.0, %v1699
        %1701 = vmatmul.f32.gmra.mxu0 %v1444
        %v1702 = vpop.f32.mrf.mxu0
        %v1703 = vadd.f32 0.0, %v1702
        %1704 = vmatmul.f32.gmra.mxu0 %v1445
        %v1705 = vpop.f32.mrf.mxu0
        %v1706 = vadd.f32 0.0, %v1705
        %1707 = vmatmul.f32.gmra.mxu0 %v1446
        %v1708 = vpop.f32.mrf.mxu0
        %v1709 = vadd.f32 0.0, %v1708
        %1710 = vdwg.mxu0
        %v1711 = vadd.f32 %v1398, %v1599
        %v1712 = vadd.f32 %v1399, %v1664
        %v1713 = vadd.f32 %v1400, %v1602
        %v1714 = vadd.f32 %v1401, %v1667
        %v1715 = vadd.f32 %v1402, %v1605
        %v1716 = vadd.f32 %v1403, %v1670
        %v1717 = vadd.f32 %v1404, %v1608
        %v1718 = vadd.f32 %v1405, %v1673
        %v1719 = vadd.f32 %v1406, %v1611
        %v1720 = vadd.f32 %v1407, %v1676
        %v1721 = vadd.f32 %v1408, %v1614
        %v1722 = vadd.f32 %v1409, %v1679
        %v1723 = vadd.f32 %v1410, %v1617
        %v1724 = vadd.f32 %v1411, %v1682
        %v1725 = vadd.f32 %v1412, %v1620
        %v1726 = vadd.f32 %v1413, %v1685
        %v1727 = vadd.f32 %v1414, %v1623
        %v1728 = vadd.f32 %v1415, %v1688
        %v1729 = vadd.f32 %v1416, %v1626
        %v1730 = vadd.f32 %v1417, %v1691
        %v1731 = vadd.f32 %v1418, %v1629
        %v1732 = vadd.f32 %v1419, %v1694
        %v1733 = vadd.f32 %v1420, %v1632
        %v1734 = vadd.f32 %v1421, %v1697
        %v1735 = vadd.f32 %v1422, %v1635
        %v1736 = vadd.f32 %v1423, %v1700
        %v1737 = vadd.f32 %v1424, %v1638
        %v1738 = vadd.f32 %v1425, %v1703
        %v1739 = vadd.f32 %v1426, %v1641
        %v1740 = vadd.f32 %v1427, %v1706
        %v1741 = vadd.f32 %v1428, %v1644
        %v1742 = vadd.f32 %v1429, %v1709
        %v1743 = vld [vmem:[%s5] sm:$0xff]
        %v1744 = vld [vmem:[%s5 + $0x8] sm:$0xff]
        %v1745 = vld [vmem:[%s5 + $0x10] sm:$0xff]
        %v1746 = vld [vmem:[%s5 + $0x18] sm:$0xff]
        %v1747 = vld [vmem:[%s5 + $0x20] sm:$0xff]
        %v1748 = vld [vmem:[%s5 + $0x28] sm:$0xff]
        %v1749 = vld [vmem:[%s5 + $0x30] sm:$0xff]
        %v1750 = vld [vmem:[%s5 + $0x38] sm:$0xff]
        %v1751 = vld [vmem:[%s5 + $0x40] sm:$0xff]
        %v1752 = vld [vmem:[%s5 + $0x48] sm:$0xff]
        %v1753 = vld [vmem:[%s5 + $0x50] sm:$0xff]
        %v1754 = vld [vmem:[%s5 + $0x58] sm:$0xff]
        %v1755 = vld [vmem:[%s5 + $0x60] sm:$0xff]
        %v1756 = vld [vmem:[%s5 + $0x68] sm:$0xff]
        %v1757 = vld [vmem:[%s5 + $0x70] sm:$0xff]
        %v1758 = vld [vmem:[%s5 + $0x78] sm:$0xff]
        %1760 = vset.pattern.permute.xlu0 0
        %1761 = vperm.xlu0 %1760, %v1743
        %v1762 = vpop.permute.xlu0 %1761
        %1765 = vset.pattern.permute.xlu0 0
        %1766 = vperm.xlu0 %1765, %v1744
        %v1767 = vpop.permute.xlu0 %1766
        %1770 = vset.pattern.permute.xlu0 0
        %1771 = vperm.xlu0 %1770, %v1745
        %v1772 = vpop.permute.xlu0 %1771
        %1775 = vset.pattern.permute.xlu0 0
        %1776 = vperm.xlu0 %1775, %v1746
        %v1777 = vpop.permute.xlu0 %1776
        %1780 = vset.pattern.permute.xlu0 0
        %1781 = vperm.xlu0 %1780, %v1747
        %v1782 = vpop.permute.xlu0 %1781
        %1785 = vset.pattern.permute.xlu0 0
        %1786 = vperm.xlu0 %1785, %v1748
        %v1787 = vpop.permute.xlu0 %1786
        %1790 = vset.pattern.permute.xlu0 0
        %1791 = vperm.xlu0 %1790, %v1749
        %v1792 = vpop.permute.xlu0 %1791
        %1795 = vset.pattern.permute.xlu0 0
        %1796 = vperm.xlu0 %1795, %v1750
        %v1797 = vpop.permute.xlu0 %1796
        %1800 = vset.pattern.permute.xlu0 0
        %1801 = vperm.xlu0 %1800, %v1751
        %v1802 = vpop.permute.xlu0 %1801
        %1805 = vset.pattern.permute.xlu0 0
        %1806 = vperm.xlu0 %1805, %v1752
        %v1807 = vpop.permute.xlu0 %1806
        %1810 = vset.pattern.permute.xlu0 0
        %1811 = vperm.xlu0 %1810, %v1753
        %v1812 = vpop.permute.xlu0 %1811
        %1815 = vset.pattern.permute.xlu0 0
        %1816 = vperm.xlu0 %1815, %v1754
        %v1817 = vpop.permute.xlu0 %1816
        %1820 = vset.pattern.permute.xlu0 0
        %1821 = vperm.xlu0 %1820, %v1755
        %v1822 = vpop.permute.xlu0 %1821
        %1825 = vset.pattern.permute.xlu0 0
        %1826 = vperm.xlu0 %1825, %v1756
        %v1827 = vpop.permute.xlu0 %1826
        %1830 = vset.pattern.permute.xlu0 0
        %1831 = vperm.xlu0 %1830, %v1757
        %v1832 = vpop.permute.xlu0 %1831
        %1835 = vset.pattern.permute.xlu0 0
        %1836 = vperm.xlu0 %1835, %v1758
        %v1837 = vpop.permute.xlu0 %1836
        %v1839 = vadd.f32 %v1711, %v1762
        %v1840 = vadd.f32 %v1712, %v1762
        %v1841 = vadd.f32 %v1713, %v1767
        %v1842 = vadd.f32 %v1714, %v1767
        %v1843 = vadd.f32 %v1715, %v1772
        %v1844 = vadd.f32 %v1716, %v1772
        %v1845 = vadd.f32 %v1717, %v1777
        %v1846 = vadd.f32 %v1718, %v1777
        %v1847 = vadd.f32 %v1719, %v1782
        %v1848 = vadd.f32 %v1720, %v1782
        %v1849 = vadd.f32 %v1721, %v1787
        %v1850 = vadd.f32 %v1722, %v1787
        %v1851 = vadd.f32 %v1723, %v1792
        %v1852 = vadd.f32 %v1724, %v1792
        %v1853 = vadd.f32 %v1725, %v1797
        %v1854 = vadd.f32 %v1726, %v1797
        %v1855 = vadd.f32 %v1727, %v1802
        %v1856 = vadd.f32 %v1728, %v1802
        %v1857 = vadd.f32 %v1729, %v1807
        %v1858 = vadd.f32 %v1730, %v1807
        %v1859 = vadd.f32 %v1731, %v1812
        %v1860 = vadd.f32 %v1732, %v1812
        %v1861 = vadd.f32 %v1733, %v1817
        %v1862 = vadd.f32 %v1734, %v1817
        %v1863 = vadd.f32 %v1735, %v1822
        %v1864 = vadd.f32 %v1736, %v1822
        %v1865 = vadd.f32 %v1737, %v1827
        %v1866 = vadd.f32 %v1738, %v1827
        %v1867 = vadd.f32 %v1739, %v1832
        %v1868 = vadd.f32 %v1740, %v1832
        %v1869 = vadd.f32 %v1741, %v1837
        %v1870 = vadd.f32 %v1742, %v1837
        %v1871 = vld [vmem:[%s6] sm:$0xff]
        %v1872 = vld [vmem:[%s7] sm:$0xff]
        %1874 = vset.pattern.permute.xlu0 0
        %1875 = vperm.xlu0 %1874, %v1872
        %v1876 = vpop.permute.xlu0 %1875
        %1878 = vmatpush.msra.mxu0 %v1869
        %1879 = vmatpush.msra.mxu0 %v1867
        %1880 = vmatpush.msra.mxu0 %v1865
        %1881 = vmatpush.msra.mxu0 %v1863
        %1882 = vmatpush.msra.mxu0 %v1861
        %1883 = vmatpush.msra.mxu0 %v1859
        %1884 = vmatpush.msra.mxu0 %v1857
        %1885 = vmatpush.msra.mxu0 %v1855
        %1886 = vmatpush.msra.mxu0 %v1853
        %1887 = vmatpush.msra.mxu0 %v1851
        %1888 = vmatpush.msra.mxu0 %v1849
        %1889 = vmatpush.msra.mxu0 %v1847
        %1890 = vmatpush.msra.mxu0 %v1845
        %1891 = vmatpush.msra.mxu0 %v1843
        %1892 = vmatpush.msra.mxu0 %v1841
        %1893 = vmatpush.msra.mxu0 %v1839
        %1894 = vmatmul.f32.gmra.mxu0 %v1871
        %v1895 = vpop.f32.mrf.mxu0
        %v1896 = vadd.f32 %v1876, %v1895
        %1897 = vdwg.mxu0
        %1898 = vmatpush.msra.mxu0 %v1870
        %1899 = vmatpush.msra.mxu0 %v1868
        %1900 = vmatpush.msra.mxu0 %v1866
        %1901 = vmatpush.msra.mxu0 %v1864
        %1902 = vmatpush.msra.mxu0 %v1862
        %1903 = vmatpush.msra.mxu0 %v1860
        %1904 = vmatpush.msra.mxu0 %v1858
        %1905 = vmatpush.msra.mxu0 %v1856
        %1906 = vmatpush.msra.mxu0 %v1854
        %1907 = vmatpush.msra.mxu0 %v1852
        %1908 = vmatpush.msra.mxu0 %v1850
        %1909 = vmatpush.msra.mxu0 %v1848
        %1910 = vmatpush.msra.mxu0 %v1846
        %1911 = vmatpush.msra.mxu0 %v1844
        %1912 = vmatpush.msra.mxu0 %v1842
        %1913 = vmatpush.msra.mxu0 %v1840
        %1914 = vmatmul.f32.gmra.mxu0 %v1871
        %v1915 = vpop.f32.mrf.mxu0
        %v1916 = vadd.f32 %v1876, %v1915
        %1917 = vdwg.mxu0
        %1918 = vst [vmem:[%s330] sm:$0xff] %v1896
        %s1919 = scalar_lea.vmem %s330, 8 [#allocation2]
        %1920 = vst [vmem:[%s1919] sm:$0xff] %v1916
        %s1921 = sand.u32 %s208, 1
        %s1922 = scalar_lea.sflag [#allocation3], %s1921
        %s1923 = sand.u32 %s208, 1
        %s1924 = smul.addr %s1923, 16
        %s1925 = scalar_lea.vmem [#allocation2], %s1924
        %s1926 = sand.u32 %s234, 1
        %s1927 = scalar_lea.sflag [#allocation5], %s1926
        %s1928 = sand.u32 %s234, 1
        %s1929 = smul.addr %s1928, 256
        %s1930 = scalar_lea.vmem [#allocation4], %s1929
        // Predicated region
        $region53: #{cleegn2vec_forward.1} parent=51 // pred_check
          %p1931 = pneg %p218
        $region54: #{cleegn2vec_forward.1} parent=51 // pred_check_branch
          %1933 = sbr.rel (%p1931) target = $region56
        $region55: #{cleegn2vec_forward.1} parent=51 // pred_region
          %s1934 = smul.u32 2, %s27
          %1936 = vsyncadd %s1922, 0
          %s1937 = smul.addr %s1934, 8
          %s1938 = scalar_lea.hbm %s8, %s1937
          %s1939 = sshll.u32 %s1925, 4
          %s1940 = int_to_ptr.vmem [resolvable:$true] %s1939
          %s1941 = sshll.u32 %s1938, 4
          %s1942 = int_to_ptr.hbm [resolvable:$true] %s1941
          %1947 = dma.vmem_to_hbm [thread:$0]  %s1940, 256, %s1942, %s1922, 128, 128, 8
        $region56: #{cleegn2vec_forward.1} parent=51 // pred_fallthru
          _
        // Predicated region
        $region57: #{cleegn2vec_forward.1} parent=51 // pred_check
          %p1948 = pneg %p244
        $region58: #{cleegn2vec_forward.1} parent=51 // pred_check_branch
          %1950 = sbr.rel (%p1948) target = $region60
        $region59: #{cleegn2vec_forward.1} parent=51 // pred_region
          %s1951 = smul.u32 2, %s27
          %1953 = vsyncadd %s1927, 0
          %s1954 = smul.addr %s1951, 16
          %s1955 = smul.addr %s1954, 8
          %s1956 = scalar_lea.hbm %s9, %s1955
          %s1957 = sshll.u32 %s1930, 4
          %s1958 = int_to_ptr.vmem [resolvable:$true] %s1957
          %s1959 = sshll.u32 %s1956, 4
          %s1960 = int_to_ptr.hbm [resolvable:$true] %s1959
          %1965 = dma.vmem_to_hbm [thread:$0]  %s1958, 4096, %s1960, %s1927, 128, 128, 8
        $region60: #{cleegn2vec_forward.1} parent=51 // pred_fallthru
          _
      $region52: #{cleegn2vec_forward.1} parent=5 // pred_fallthru
        _
      %p1966 = scmp.le.s32.totalorder 2, %s22
      // Predicated region
      $region61: #{cleegn2vec_forward.1} parent=5 // pred_check
        %p1967 = pneg %p1966
      $region62: #{cleegn2vec_forward.1} parent=5 // pred_check_branch
        %1969 = sbr.rel (%p1967) target = $region64
      $region63: #{cleegn2vec_forward.1} parent=5 // pred_region
        %s1970 = ssub.s32 %s22, 2
        // Predicated region
        $region65: #{cleegn2vec_forward.1} parent=63 // pred_check
          %p1971 = pneg %p224
        $region66: #{cleegn2vec_forward.1} parent=63 // pred_check_branch
          %1973 = sbr.rel (%p1971) target = $region68
        $region67: #{cleegn2vec_forward.1} parent=63 // pred_region
          %s1974 = sand.u32 %s209, 1
          %s1975 = scalar_lea.sflag [#allocation3], %s1974
          %s1976 = sand.u32 %s209, 1
          %s1977 = smul.addr %s1976, 16
          %s1978 = scalar_lea.vmem [#allocation2], %s1977
          %1980 = dma.done %s1975, 256
        $region68: #{cleegn2vec_forward.1} parent=63 // pred_fallthru
          _
        // Predicated region
        $region69: #{cleegn2vec_forward.1} parent=63 // pred_check
          %p1981 = pneg %p250
        $region70: #{cleegn2vec_forward.1} parent=63 // pred_check_branch
          %1983 = sbr.rel (%p1981) target = $region72
        $region71: #{cleegn2vec_forward.1} parent=63 // pred_region
          %s1984 = sand.u32 %s235, 1
          %s1985 = scalar_lea.sflag [#allocation5], %s1984
          %s1986 = sand.u32 %s235, 1
          %s1987 = smul.addr %s1986, 256
          %s1988 = scalar_lea.vmem [#allocation4], %s1987
          %1990 = dma.done %s1985, 4096
        $region72: #{cleegn2vec_forward.1} parent=63 // pred_fallthru
          _
      $region64: #{cleegn2vec_forward.1} parent=5 // pred_fallthru
        _
    $region6: #{cleegn2vec_forward.1} parent=1 // loop_footer
      %s26 = sadd.s32 1, %s22
    $region7: #{cleegn2vec_forward.1} parent=1 // loop_footer_branch
      %21 = sbr.rel target = $region3
    $region8: #{cleegn2vec_forward.1} parent=1 // loop_exit
      _
    %1991 = vsyncpa [#allocation3], 1
    %s1992 = scalar_lea.sflag [#allocation3], 1
    %1993 = vsyncpa %s1992, 1
    %1994 = vsyncpa [#allocation5], 1
    %s1995 = scalar_lea.sflag [#allocation5], 1
    %1996 = vsyncpa %s1995, 1

</llo_original>
